<compile_context>
chip_gen: v5e
topology: v5e:2x2
jax: 0.10.0
libtpu: 0.0.40
codegen_flags: <defaults>
</compile_context>

<pallas_src>
import jax
import jax.numpy as jnp
from jax.experimental import pallas as pl
from jax.experimental.pallas import tpu as pltpu


def _round_up(x, m):
    return (x + m - 1) // m * m


# ----------------------------------------------------------------------------
# Pallas kernel: fused transposed matmul + bias + ReLU
#   o[Cout, tm] = relu(w[Cout, K] @ p[K, tm] + b[Cout, 1])
# ----------------------------------------------------------------------------
def _convmm_bias_relu_kernel(w_ref, b_ref, p_ref, o_ref):
    acc = jnp.dot(w_ref[...], p_ref[...], preferred_element_type=jnp.float32)
    acc = acc + b_ref[...]                       # (Cout, 1) broadcast over lanes
    o_ref[...] = jnp.maximum(acc, 0.0).astype(o_ref.dtype)


def conv_matmul_bias_relu(pT, wT, b, out_dtype, tm=512):
    """pT: (K, M) bf16 patches, wT: (Cout, K) bf16 weights, b: (Cout, 1) f32."""
    K, M = pT.shape
    Cout, Kw = wT.shape
    assert K == Kw, (K, Kw)

    K_pad = _round_up(K, 128)                    # full-lane MXU feed (576 -> 640)
    tm = min(tm, _round_up(M, 128))              # lane-dense output tiles
    M_pad = _round_up(M, tm)

    if K_pad != K or M_pad != M:
        pT = jnp.pad(pT, ((0, K_pad - K), (0, M_pad - M)))
    if K_pad != K:
        wT = jnp.pad(wT, ((0, 0), (0, K_pad - K)))

    out = pl.pallas_call(
        _convmm_bias_relu_kernel,
        out_shape=jax.ShapeDtypeStruct((Cout, M_pad), out_dtype),
        grid=(M_pad // tm,),
        in_specs=[
            pl.BlockSpec((Cout, K_pad), lambda i: (0, 0)),   # weights: resident
            pl.BlockSpec((Cout, 1), lambda i: (0, 0)),       # bias: resident
            pl.BlockSpec((K_pad, tm), lambda i: (0, i)),     # patches: tiled M
        ],
        out_specs=pl.BlockSpec((Cout, tm), lambda i: (0, i)),
        compiler_params=pltpu.CompilerParams(
            dimension_semantics=("parallel",),               # megacore on v7x
            vmem_limit_bytes=32 * 1024 * 1024),
    )(wT, b, pT)
    return out[:, :M] if M_pad != M else out


# ----------------------------------------------------------------------------
# JAX glue: im2col on CNHW activations -> P^T (K, M), no transposes needed.
# TODO(synk): fuse im2col (and ideally the whole 3-conv chain) into the Pallas
#             kernel with in-kernel strided ref slicing to eliminate the HBM
#             patch materialization and inter-layer round trips.
# ----------------------------------------------------------------------------
def im2col_T(x_cnhw, kh, kw, stride):
    """P^T of shape (Cin*kh*kw, N*oh*ow); row order (cin, kh, kw) matches
    torch's flattened (Cout, Cin*kh*kw) weight layout; columns are (n, oh, ow)."""
    c, n, h, w = x_cnhw.shape
    oh = (h - kh) // stride + 1
    ow = (w - kw) // stride + 1
    cols = []
    for i in range(kh):
        for j in range(kw):
            cols.append(x_cnhw[:, :, i:i + (oh - 1) * stride + 1:stride,
                                     j:j + (ow - 1) * stride + 1:stride])
    p = jnp.stack(cols, axis=1)                  # (c, kh*kw, n, oh, ow)
    return p.reshape(c * kh * kw, n * oh * ow), oh, ow


# ----------------------------------------------------------------------------
# Parameter init: orthogonal with gain=sqrt(2) (calculate_gain('relu')), zero
# bias, matching nn.init.orthogonal_ on the (Cout, Cin*kh*kw) flattening.
# ----------------------------------------------------------------------------
def _orthogonal(key, rows, cols, gain):
    a = jax.random.normal(key, (max(rows, cols), min(rows, cols)), jnp.float32)
    q, r = jnp.linalg.qr(a)
    d = jnp.diagonal(r)
    q = q * jnp.where(d == 0, 1.0, jnp.sign(d))
    if rows < cols:
        q = q.T
    return gain * q[:rows, :cols]


def make_conv_params(key, cout, cin, k, gain):
    # torch weight is (Cout, Cin, kh, kw); its (Cout, Cin*kh*kw) flattening is
    # exactly the W^T operand our transposed kernel consumes.
    wT = _orthogonal(key, cout, cin * k * k, gain)
    b = jnp.zeros((cout, 1), jnp.float32)
    return wT.astype(jnp.bfloat16), b


# ----------------------------------------------------------------------------
# Full forward pass matching deepmind.forward
# ----------------------------------------------------------------------------
@jax.jit
def deepmind_forward(x_nchw, params):
    (w1, b1), (w2, b2), (w3, b3) = params
    n = x_nchw.shape[0]
    # NCHW -> CNHW, bf16 (MXU-native operands, half the HBM traffic).
    x = jnp.transpose(x_nchw, (1, 0, 2, 3)).astype(jnp.bfloat16)

    # conv1: 4 -> 32, 8x8, stride 4, ReLU         (K=256, M=n*20*20)
    p, oh, ow = im2col_T(x, 8, 8, 4)
    x = conv_matmul_bias_relu(p, w1, b1, jnp.bfloat16).reshape(32, n, oh, ow)

    # conv2: 32 -> 64, 4x4, stride 2, ReLU        (K=512, M=n*9*9)
    p, oh, ow = im2col_T(x, 4, 4, 2)
    x = conv_matmul_bias_relu(p, w2, b2, jnp.bfloat16).reshape(64, n, oh, ow)

    # conv3: 64 -> 32, 3x3, stride 1, ReLU        (K=576 -> padded 640 in-kernel)
    p, oh, ow = im2col_T(x, 3, 3, 1)
    y = conv_matmul_bias_relu(p, w3, b3, jnp.float32)    # (32, n*49) f32

    # torch x.view(-1, 32*7*7) flattens per-image in (C, H, W) order.
    return jnp.transpose(y.reshape(32, n, oh * ow), (1, 0, 2)).reshape(
        n, 32 * oh * ow)


if __name__ == "__main__":
    key = jax.random.PRNGKey(0)
    k1, k2, k3, kx = jax.random.split(key, 4)
    gain = float(jnp.sqrt(2.0))                  # calculate_gain('relu')

    params = (
        make_conv_params(k1, 32, 4, 8, gain),
        make_conv_params(k2, 64, 32, 4, gain),
        make_conv_params(k3, 32, 64, 3, gain),
    )

    # The module's final view(-1, 32*7*7) implies 84x84 spatial, 4 channels.
    x = jax.random.normal(kx, (2, 4, 84, 84), dtype=jnp.float32)

    out = jax.block_until_ready(deepmind_forward(x, params))
    assert out.shape == (2, 32 * 7 * 7), out.shape
    assert bool(jnp.all(out >= 0.0))             # ReLU output
    assert bool(jnp.all(jnp.isfinite(out)))
    print("KERNEL_OK")
</pallas_src>

<mosaic_0001>
module attributes {stable_mosaic.version = 11 : i64} {
  func.func @_convmm_bias_relu_kernel(%arg0: i32, %arg1: memref<32x256xbf16, #tpu.memory_space<vmem>>, %arg2: memref<32x1xf32, #tpu.memory_space<vmem>>, %arg3: memref<256x512xbf16, #tpu.memory_space<vmem>>, %arg4: memref<32x512xbf16, #tpu.memory_space<vmem>>) attributes {dimension_semantics = [#tpu.dimension_semantics<parallel>], iteration_bounds = array<i64: 2>, scalar_prefetch = 0 : i64, scratch_operands = 0 : i64, tpu.core_type = #tpu.core_type<tc>, window_params = [{pipeline_mode = #tpu.pipeline_mode<synchronous>, transform_indices = @transform_0, window_bounds = array<i64: 32, 256>}, {pipeline_mode = #tpu.pipeline_mode<synchronous>, transform_indices = @transform_1, window_bounds = array<i64: 32, 1>}, {transform_indices = @transform_2, window_bounds = array<i64: 256, 512>}, {transform_indices = @transform_3, window_bounds = array<i64: 32, 512>}]} {
    %c0 = arith.constant 0 : index
    %c0_0 = arith.constant 0 : index
    %0 = vector.load %arg1[%c0, %c0_0] : memref<32x256xbf16, #tpu.memory_space<vmem>>, vector<32x256xbf16>
    %c0_1 = arith.constant 0 : index
    %c0_2 = arith.constant 0 : index
    %1 = vector.load %arg3[%c0_1, %c0_2] : memref<256x512xbf16, #tpu.memory_space<vmem>>, vector<256x512xbf16>
    %cst = arith.constant dense<0.000000e+00> : vector<32x512xf32>
    %2 = tpu.matmul %0, %1, %cst {dimension_numbers = #tpu.dot_dimension_numbers<[1], [0], [0], [1], [0, 0, 1, 1], [], []>} : vector<32x256xbf16>, vector<256x512xbf16>, vector<32x512xf32> -> vector<32x512xf32>
    %c0_3 = arith.constant 0 : index
    %c0_4 = arith.constant 0 : index
    %3 = vector.load %arg2[%c0_3, %c0_4] : memref<32x1xf32, #tpu.memory_space<vmem>>, vector<32x1xf32>
    %4 = vector.broadcast %3 : vector<32x1xf32> to vector<32x512xf32>
    %5 = arith.addf %2, %4 : vector<32x512xf32>
    %cst_5 = arith.constant 0.000000e+00 : f32
    %6 = vector.broadcast %cst_5 : f32 to vector<32x512xf32>
    %7 = arith.maximumf %5, %6 : vector<32x512xf32>
    %8 = arith.truncf %7 : vector<32x512xf32> to vector<32x512xbf16>
    %c0_6 = arith.constant 0 : index
    %c0_7 = arith.constant 0 : index
    %9 = vector.load %arg4[%c0_6, %c0_7] : memref<32x512xbf16, #tpu.memory_space<vmem>>, vector<32x512xbf16>
    tpu.vector_store %arg4[%c0_6, %c0_7], %8 {strides = array<i32>} : memref<32x512xbf16, #tpu.memory_space<vmem>>, vector<32x512xbf16>,
    return
  }
  func.func @transform_0(%arg0: i32) -> (i32, i32) {
    %c0_i32 = arith.constant 0 : i32
    %c0_i32_0 = arith.constant 0 : i32
    %c0_i32_1 = arith.constant 0 : i32
    return %c0_i32, %c0_i32_0 : i32, i32
  }
  func.func @transform_1(%arg0: i32) -> (i32, i32) {
    %c0_i32 = arith.constant 0 : i32
    %c0_i32_0 = arith.constant 0 : i32
    %c0_i32_1 = arith.constant 0 : i32
    return %c0_i32, %c0_i32_0 : i32, i32
  }
  func.func @transform_2(%arg0: i32) -> (i32, i32) {
    %c0_i32 = arith.constant 0 : i32
    %c0_i32_0 = arith.constant 0 : i32
    return %c0_i32, %arg0 : i32, i32
  }
  func.func @transform_3(%arg0: i32) -> (i32, i32) {
    %c0_i32 = arith.constant 0 : i32
    %c0_i32_0 = arith.constant 0 : i32
    return %c0_i32, %arg0 : i32, i32
  }
}

module attributes {stable_mosaic.version = 11 : i64} {
  func.func @_convmm_bias_relu_kernel(%arg0: i32, %arg1: memref<64x512xbf16, #tpu.memory_space<vmem>>, %arg2: memref<64x1xf32, #tpu.memory_space<vmem>>, %arg3: memref<512x256xbf16, #tpu.memory_space<vmem>>, %arg4: memref<64x256xbf16, #tpu.memory_space<vmem>>) attributes {dimension_semantics = [#tpu.dimension_semantics<parallel>], iteration_bounds = array<i64: 1>, scalar_prefetch = 0 : i64, scratch_operands = 0 : i64, tpu.core_type = #tpu.core_type<tc>, window_params = [{pipeline_mode = #tpu.pipeline_mode<synchronous>, transform_indices = @transform_0, window_bounds = array<i64: 64, 512>}, {pipeline_mode = #tpu.pipeline_mode<synchronous>, transform_indices = @transform_1, window_bounds = array<i64: 64, 1>}, {transform_indices = @transform_2, window_bounds = array<i64: 512, 256>}, {transform_indices = @transform_3, window_bounds = array<i64: 64, 256>}]} {
    %c0 = arith.constant 0 : index
    %c0_0 = arith.constant 0 : index
    %0 = vector.load %arg1[%c0, %c0_0] : memref<64x512xbf16, #tpu.memory_space<vmem>>, vector<64x512xbf16>
    %c0_1 = arith.constant 0 : index
    %c0_2 = arith.constant 0 : index
    %1 = vector.load %arg3[%c0_1, %c0_2] : memref<512x256xbf16, #tpu.memory_space<vmem>>, vector<512x256xbf16>
    %cst = arith.constant dense<0.000000e+00> : vector<64x256xf32>
    %2 = tpu.matmul %0, %1, %cst {dimension_numbers = #tpu.dot_dimension_numbers<[1], [0], [0], [1], [0, 0, 1, 1], [], []>} : vector<64x512xbf16>, vector<512x256xbf16>, vector<64x256xf32> -> vector<64x256xf32>
    %c0_3 = arith.constant 0 : index
    %c0_4 = arith.constant 0 : index
    %3 = vector.load %arg2[%c0_3, %c0_4] : memref<64x1xf32, #tpu.memory_space<vmem>>, vector<64x1xf32>
    %4 = vector.broadcast %3 : vector<64x1xf32> to vector<64x256xf32>
    %5 = arith.addf %2, %4 : vector<64x256xf32>
    %cst_5 = arith.constant 0.000000e+00 : f32
    %6 = vector.broadcast %cst_5 : f32 to vector<64x256xf32>
    %7 = arith.maximumf %5, %6 : vector<64x256xf32>
    %8 = arith.truncf %7 : vector<64x256xf32> to vector<64x256xbf16>
    %c0_6 = arith.constant 0 : index
    %c0_7 = arith.constant 0 : index
    %9 = vector.load %arg4[%c0_6, %c0_7] : memref<64x256xbf16, #tpu.memory_space<vmem>>, vector<64x256xbf16>
    tpu.vector_store %arg4[%c0_6, %c0_7], %8 {strides = array<i32>} : memref<64x256xbf16, #tpu.memory_space<vmem>>, vector<64x256xbf16>,
    return
  }
  func.func @transform_0(%arg0: i32) -> (i32, i32) {
    %c0_i32 = arith.constant 0 : i32
    %c0_i32_0 = arith.constant 0 : i32
    %c0_i32_1 = arith.constant 0 : i32
    return %c0_i32, %c0_i32_0 : i32, i32
  }
  func.func @transform_1(%arg0: i32) -> (i32, i32) {
    %c0_i32 = arith.constant 0 : i32
    %c0_i32_0 = arith.constant 0 : i32
    %c0_i32_1 = arith.constant 0 : i32
    return %c0_i32, %c0_i32_0 : i32, i32
  }
  func.func @transform_2(%arg0: i32) -> (i32, i32) {
    %c0_i32 = arith.constant 0 : i32
    %c0_i32_0 = arith.constant 0 : i32
    return %c0_i32, %arg0 : i32, i32
  }
  func.func @transform_3(%arg0: i32) -> (i32, i32) {
    %c0_i32 = arith.constant 0 : i32
    %c0_i32_0 = arith.constant 0 : i32
    return %c0_i32, %arg0 : i32, i32
  }
}

module attributes {stable_mosaic.version = 11 : i64} {
  func.func @_convmm_bias_relu_kernel(%arg0: i32, %arg1: memref<32x640xbf16, #tpu.memory_space<vmem>>, %arg2: memref<32x1xf32, #tpu.memory_space<vmem>>, %arg3: memref<640x128xbf16, #tpu.memory_space<vmem>>, %arg4: memref<32x128xf32, #tpu.memory_space<vmem>>) attributes {dimension_semantics = [#tpu.dimension_semantics<parallel>], iteration_bounds = array<i64: 1>, scalar_prefetch = 0 : i64, scratch_operands = 0 : i64, tpu.core_type = #tpu.core_type<tc>, window_params = [{pipeline_mode = #tpu.pipeline_mode<synchronous>, transform_indices = @transform_0, window_bounds = array<i64: 32, 640>}, {pipeline_mode = #tpu.pipeline_mode<synchronous>, transform_indices = @transform_1, window_bounds = array<i64: 32, 1>}, {transform_indices = @transform_2, window_bounds = array<i64: 640, 128>}, {transform_indices = @transform_3, window_bounds = array<i64: 32, 128>}]} {
    %c0 = arith.constant 0 : index
    %c0_0 = arith.constant 0 : index
    %0 = vector.load %arg1[%c0, %c0_0] : memref<32x640xbf16, #tpu.memory_space<vmem>>, vector<32x640xbf16>
    %c0_1 = arith.constant 0 : index
    %c0_2 = arith.constant 0 : index
    %1 = vector.load %arg3[%c0_1, %c0_2] : memref<640x128xbf16, #tpu.memory_space<vmem>>, vector<640x128xbf16>
    %cst = arith.constant dense<0.000000e+00> : vector<32x128xf32>
    %2 = tpu.matmul %0, %1, %cst {dimension_numbers = #tpu.dot_dimension_numbers<[1], [0], [0], [1], [0, 0, 1, 1], [], []>} : vector<32x640xbf16>, vector<640x128xbf16>, vector<32x128xf32> -> vector<32x128xf32>
    %c0_3 = arith.constant 0 : index
    %c0_4 = arith.constant 0 : index
    %3 = vector.load %arg2[%c0_3, %c0_4] : memref<32x1xf32, #tpu.memory_space<vmem>>, vector<32x1xf32>
    %4 = vector.broadcast %3 : vector<32x1xf32> to vector<32x128xf32>
    %5 = arith.addf %2, %4 : vector<32x128xf32>
    %cst_5 = arith.constant 0.000000e+00 : f32
    %6 = vector.broadcast %cst_5 : f32 to vector<32x128xf32>
    %7 = arith.maximumf %5, %6 : vector<32x128xf32>
    %c0_6 = arith.constant 0 : index
    %c0_7 = arith.constant 0 : index
    %8 = vector.load %arg4[%c0_6, %c0_7] : memref<32x128xf32, #tpu.memory_space<vmem>>, vector<32x128xf32>
    tpu.vector_store %arg4[%c0_6, %c0_7], %7 {strides = array<i32>} : memref<32x128xf32, #tpu.memory_space<vmem>>, vector<32x128xf32>,
    return
  }
  func.func @transform_0(%arg0: i32) -> (i32, i32) {
    %c0_i32 = arith.constant 0 : i32
    %c0_i32_0 = arith.constant 0 : i32
    %c0_i32_1 = arith.constant 0 : i32
    return %c0_i32, %c0_i32_0 : i32, i32
  }
  func.func @transform_1(%arg0: i32) -> (i32, i32) {
    %c0_i32 = arith.constant 0 : i32
    %c0_i32_0 = arith.constant 0 : i32
    %c0_i32_1 = arith.constant 0 : i32
    return %c0_i32, %c0_i32_0 : i32, i32
  }
  func.func @transform_2(%arg0: i32) -> (i32, i32) {
    %c0_i32 = arith.constant 0 : i32
    %c0_i32_0 = arith.constant 0 : i32
    return %c0_i32, %arg0 : i32, i32
  }
  func.func @transform_3(%arg0: i32) -> (i32, i32) {
    %c0_i32 = arith.constant 0 : i32
    %c0_i32_0 = arith.constant 0 : i32
    return %c0_i32, %arg0 : i32, i32
  }
}

</mosaic_0001>

<llo_original>
// kernel: deepmind_forward.3
$region0: #{deepmind_forward.3}
  #allocation0 [shape = 'u32[]', space=smem, size = 0x4, offset = 0x4, fixed_abs, tag = 'smem constant byte address 0x4 - core index']
  #allocation1 [shape = 'u32[72,128]{1,0:T(1,128)}', space=vmem, size = 0x9000, scoped, tag = 'internal scratch']
  %s0 = inlined_call_operand.vmem [shape: bf16[32,256], index: 0, kind: input, shape index: {}]
  %s1 = inlined_call_operand.vmem [shape: f32[32,1], index: 1, kind: input, shape index: {}]
  %s2 = inlined_call_operand.vmem [shape: bf16[256,1024], index: 2, kind: input, shape index: {}]
  %s3 = inlined_call_operand.vmem [shape: bf16[32,1024], index: 3, kind: output, shape index: {}]
  %s4 = sld [smem:[#allocation0]]
  $region87: #{deepmind_forward.3} parent=0
    _
  %s6 = ssub.s32 1, %s4
  %s7 = scalar_select 0, %s6, %s4
  $region1: #{deepmind_forward.3} parent=0
    #allocation2 [shape = 'u8[524288]{0}', space=vmem, size = 0x80000, scoped, tag = 'input window, operand 2']
    #allocation3 [shape = 'u8[65536]{0}', space=vmem, size = 0x10000, scoped, tag = 'output window, operand 0']
    loop: start=0, step=1, limit=4
    $region2: #{deepmind_forward.3} parent=1 // loop_pre_header
      _
    $region3: #{deepmind_forward.3} parent=1 // loop_header
      %s9 = sphi 0, %s13
      %p10 = scmp.ge.s32.totalorder %s9, 4
      %s17 = sphi 0, %s17
      %s19 = sphi 0, %s17
      %s20 = sphi 0, %s19
      %s34 = sphi 0, %s20
      %s38 = sphi 0, %s38
      %s40 = sphi 0, %s38
      %s41 = sphi 0, %s40
      %s55 = sphi 0, %s41
      %s61 = sphi 0, %s63
      %s64 = sphi 0, %s61
      %s65 = sphi 0, %s64
      %s81 = sphi 0, %s65
      %s87 = sphi 0, %s89
      %s90 = sphi 0, %s87
      %s91 = sphi 0, %s90
      %s107 = sphi 0, %s91
    $region4: #{deepmind_forward.3} parent=1 // loop_header_branch
      %12 = sbr.rel (%p10) target = $region8
    $region5: #{deepmind_forward.3} parent=1 // loop_body
      %s14 = ssub.s32 %s9, 1
      %s15 = ssub.s32 %s9, 2
      %s16 = sadd.s32 %s9, 1
      %s18 = sadd.s32 %s17, 1
      %p21 = scmp.eq.s32.totalorder %s9, 1
      %p22 = scmp.ne.s32.totalorder %s17, %s19
      %p23 = scmp.eq.s32.totalorder %s9, 0
      %p24 = por %p22, %p23
      %p25 = scmp.ne.s32.totalorder %s17, %s19
      %p26 = scmp.eq.s32.totalorder %s14, 1
      %p27 = por %p25, %p26
      %p28 = scmp.ne.s32.totalorder %s19, %s20
      %p29 = scmp.eq.s32.totalorder %s14, 0
      %p30 = por %p28, %p29
      %p31 = scmp.ne.s32.totalorder %s19, %s20
      %p32 = scmp.eq.s32.totalorder %s15, 1
      %p33 = por %p31, %p32
      %p35 = scmp.ne.s32.totalorder %s20, %s34
      %p36 = scmp.eq.s32.totalorder %s15, 0
      %p37 = por %p35, %p36
      %s39 = sadd.s32 %s38, 1
      %p42 = scmp.eq.s32.totalorder %s9, 1
      %p43 = scmp.ne.s32.totalorder %s38, %s40
      %p44 = scmp.eq.s32.totalorder %s9, 0
      %p45 = por %p43, %p44
      %p46 = scmp.ne.s32.totalorder %s38, %s40
      %p47 = scmp.eq.s32.totalorder %s14, 1
      %p48 = por %p46, %p47
      %p49 = scmp.ne.s32.totalorder %s40, %s41
      %p50 = scmp.eq.s32.totalorder %s14, 0
      %p51 = por %p49, %p50
      %p52 = scmp.ne.s32.totalorder %s40, %s41
      %p53 = scmp.eq.s32.totalorder %s15, 1
      %p54 = por %p52, %p53
      %p56 = scmp.ne.s32.totalorder %s41, %s55
      %p57 = scmp.eq.s32.totalorder %s15, 0
      %p58 = por %p56, %p57
      %s59 = ssub.s32 %s9, %s16
      %p60 = scmp.eq.s32.totalorder %s59, 0
      %s62 = sadd.s32 %s61, 1
      %s63 = scalar_select %p60, %s61, %s62
      %p66 = pneg %p60
      %p67 = scmp.eq.s32.totalorder %s9, 1
      %p68 = por %p66, %p67
      %p69 = scmp.ne.s32.totalorder %s61, %s64
      %p70 = scmp.eq.s32.totalorder %s9, 0
      %p71 = por %p69, %p70
      %p72 = scmp.ne.s32.totalorder %s61, %s64
      %p73 = scmp.eq.s32.totalorder %s14, 1
      %p74 = por %p72, %p73
      %p75 = scmp.ne.s32.totalorder %s64, %s65
      %p76 = scmp.eq.s32.totalorder %s14, 0
      %p77 = por %p75, %p76
      %p78 = scmp.ne.s32.totalorder %s64, %s65
      %p79 = scmp.eq.s32.totalorder %s15, 1
      %p80 = por %p78, %p79
      %p82 = scmp.ne.s32.totalorder %s65, %s81
      %p83 = scmp.eq.s32.totalorder %s15, 0
      %p84 = por %p82, %p83
      %s85 = ssub.s32 %s9, %s16
      %p86 = scmp.eq.s32.totalorder %s85, 0
      %s88 = sadd.s32 %s87, 1
      %s89 = scalar_select %p86, %s87, %s88
      %p92 = pneg %p86
      %p93 = scmp.eq.s32.totalorder %s9, 1
      %p94 = por %p92, %p93
      %p95 = scmp.ne.s32.totalorder %s87, %s90
      %p96 = scmp.eq.s32.totalorder %s9, 0
      %p97 = por %p95, %p96
      %p98 = scmp.ne.s32.totalorder %s87, %s90
      %p99 = scmp.eq.s32.totalorder %s14, 1
      %p100 = por %p98, %p99
      %p101 = scmp.ne.s32.totalorder %s90, %s91
      %p102 = scmp.eq.s32.totalorder %s14, 0
      %p103 = por %p101, %p102
      %p104 = scmp.ne.s32.totalorder %s90, %s91
      %p105 = scmp.eq.s32.totalorder %s15, 1
      %p106 = por %p104, %p105
      %p108 = scmp.ne.s32.totalorder %s91, %s107
      %p109 = scmp.eq.s32.totalorder %s15, 0
      %p110 = por %p108, %p109
      %p111 = scmp.le.s32.totalorder 1, %s9
      %p112 = scmp.lt.s32.totalorder %s9, 3
      %p113 = pnand %p111, %p112
      %p114 = pneg %p113
      // Predicated region
      $region9: #{deepmind_forward.3} parent=5 // pred_check
        _
      $region10: #{deepmind_forward.3} parent=5 // pred_check_branch
        %116 = sbr.rel (%p113) target = $region12
      $region11: #{deepmind_forward.3} parent=5 // pred_region
        %s117 = ssub.s32 %s9, 1
        // Predicated region
        $region13: #{deepmind_forward.3} parent=11 // pred_check
          %p118 = pneg %p30
        $region14: #{deepmind_forward.3} parent=11 // pred_check_branch
          %120 = sbr.rel (%p118) target = $region16
        $region15: #{deepmind_forward.3} parent=11 // pred_region
          _
        $region16: #{deepmind_forward.3} parent=11 // pred_fallthru
          _
        // Predicated region
        $region17: #{deepmind_forward.3} parent=11 // pred_check
          %p121 = pneg %p51
        $region18: #{deepmind_forward.3} parent=11 // pred_check_branch
          %123 = sbr.rel (%p121) target = $region20
        $region19: #{deepmind_forward.3} parent=11 // pred_region
          _
        $region20: #{deepmind_forward.3} parent=11 // pred_fallthru
          _
      $region12: #{deepmind_forward.3} parent=5 // pred_fallthru
        _
      %p124 = scmp.lt.s32.totalorder %s9, 2
      // Predicated region
      $region21: #{deepmind_forward.3} parent=5 // pred_check
        %p125 = pneg %p124
      $region22: #{deepmind_forward.3} parent=5 // pred_check_branch
        %127 = sbr.rel (%p125) target = $region24
      $region23: #{deepmind_forward.3} parent=5 // pred_region
        // Predicated region
        $region25: #{deepmind_forward.3} parent=23 // pred_check
          %p128 = pneg %p71
        $region26: #{deepmind_forward.3} parent=23 // pred_check_branch
          %130 = sbr.rel (%p128) target = $region28
        $region27: #{deepmind_forward.3} parent=23 // pred_region
          %s131 = sand.u32 %s61, 1
          %s132 = sand.u32 %s61, 1
          %s133 = smul.addr %s132, 512
          %s134 = scalar_lea.vmem [#allocation2], %s133
          %s135 = smul.u32 4, %s9
          %s136 = smul.addr %s135, 4
          %s137 = scalar_lea.vmem %s2, %s136
          // Predicated region
          $region29: #{deepmind_forward.3} parent=27 // pred_check
            _
          $region30: #{deepmind_forward.3} parent=27 // pred_check_branch
            %139 = sbr.rel (0) target = $region32
          $region31: #{deepmind_forward.3} parent=27 // pred_region
            // Predicated region
            $region33: #{deepmind_forward.3} parent=31 // pred_check
              _
            $region34: #{deepmind_forward.3} parent=31 // pred_check_branch
              %141 = sbr.rel (0) target = $region36
            $region35: #{deepmind_forward.3} parent=31 // pred_region
              loop: start=0, step=1, limit=1
              $region37: #{deepmind_forward.3} parent=35 // loop_pre_header
                _
              $region38: #{deepmind_forward.3} parent=35 // loop_header
                %s143 = sphi 0, %s147
                %p144 = scmp.ge.s32.totalorder %s143, 1
                %s148 = sphi %s137, %s137
                %s149 = sphi %s134, %s134
              $region39: #{deepmind_forward.3} parent=35 // loop_header_branch
                %146 = sbr.rel (%p144) target = $region43
              $region40: #{deepmind_forward.3} parent=35 // loop_body
                %v150 = vld [vmem:[%s148] sm:$0xff]
                %151 = vst [vmem:[%s149] sm:$0xff] %v150
                %v152 = vld [vmem:[%s148 + $0x8] sm:$0xff]
                %153 = vst [vmem:[%s149 + $0x8] sm:$0xff] %v152
                %v154 = vld [vmem:[%s148 + $0x20] sm:$0xff]
                %155 = vst [vmem:[%s149 + $0x10] sm:$0xff] %v154
                %v156 = vld [vmem:[%s148 + $0x28] sm:$0xff]
                %157 = vst [vmem:[%s149 + $0x18] sm:$0xff] %v156
                %v158 = vld [vmem:[%s148 + $0x40] sm:$0xff]
                %159 = vst [vmem:[%s149 + $0x20] sm:$0xff] %v158
                %v160 = vld [vmem:[%s148 + $0x48] sm:$0xff]
                %161 = vst [vmem:[%s149 + $0x28] sm:$0xff] %v160
                %v162 = vld [vmem:[%s148 + $0x60] sm:$0xff]
                %163 = vst [vmem:[%s149 + $0x30] sm:$0xff] %v162
                %v164 = vld [vmem:[%s148 + $0x68] sm:$0xff]
                %165 = vst [vmem:[%s149 + $0x38] sm:$0xff] %v164
                %v166 = vld [vmem:[%s148 + $0x80] sm:$0xff]
                %167 = vst [vmem:[%s149 + $0x40] sm:$0xff] %v166
                %v168 = vld [vmem:[%s148 + $0x88] sm:$0xff]
                %169 = vst [vmem:[%s149 + $0x48] sm:$0xff] %v168
                %v170 = vld [vmem:[%s148 + $0xa0] sm:$0xff]
                %171 = vst [vmem:[%s149 + $0x50] sm:$0xff] %v170
                %v172 = vld [vmem:[%s148 + $0xa8] sm:$0xff]
                %173 = vst [vmem:[%s149 + $0x58] sm:$0xff] %v172
                %v174 = vld [vmem:[%s148 + $0xc0] sm:$0xff]
                %175 = vst [vmem:[%s149 + $0x60] sm:$0xff] %v174
                %v176 = vld [vmem:[%s148 + $0xc8] sm:$0xff]
                %177 = vst [vmem:[%s149 + $0x68] sm:$0xff] %v176
                %v178 = vld [vmem:[%s148 + $0xe0] sm:$0xff]
                %179 = vst [vmem:[%s149 + $0x70] sm:$0xff] %v178
                %v180 = vld [vmem:[%s148 + $0xe8] sm:$0xff]
                %181 = vst [vmem:[%s149 + $0x78] sm:$0xff] %v180
                %v182 = vld [vmem:[%s148 + $0x100] sm:$0xff]
                %183 = vst [vmem:[%s149 + $0x80] sm:$0xff] %v182
                %v184 = vld [vmem:[%s148 + $0x108] sm:$0xff]
                %185 = vst [vmem:[%s149 + $0x88] sm:$0xff] %v184
                %v186 = vld [vmem:[%s148 + $0x120] sm:$0xff]
                %187 = vst [vmem:[%s149 + $0x90] sm:$0xff] %v186
                %v188 = vld [vmem:[%s148 + $0x128] sm:$0xff]
                %189 = vst [vmem:[%s149 + $0x98] sm:$0xff] %v188
                %v190 = vld [vmem:[%s148 + $0x140] sm:$0xff]
                %191 = vst [vmem:[%s149 + $0xa0] sm:$0xff] %v190
                %v192 = vld [vmem:[%s148 + $0x148] sm:$0xff]
                %193 = vst [vmem:[%s149 + $0xa8] sm:$0xff] %v192
                %v194 = vld [vmem:[%s148 + $0x160] sm:$0xff]
                %195 = vst [vmem:[%s149 + $0xb0] sm:$0xff] %v194
                %v196 = vld [vmem:[%s148 + $0x168] sm:$0xff]
                %197 = vst [vmem:[%s149 + $0xb8] sm:$0xff] %v196
                %v198 = vld [vmem:[%s148 + $0x180] sm:$0xff]
                %199 = vst [vmem:[%s149 + $0xc0] sm:$0xff] %v198
                %v200 = vld [vmem:[%s148 + $0x188] sm:$0xff]
                %201 = vst [vmem:[%s149 + $0xc8] sm:$0xff] %v200
                %v202 = vld [vmem:[%s148 + $0x1a0] sm:$0xff]
                %203 = vst [vmem:[%s149 + $0xd0] sm:$0xff] %v202
                %v204 = vld [vmem:[%s148 + $0x1a8] sm:$0xff]
                %205 = vst [vmem:[%s149 + $0xd8] sm:$0xff] %v204
                %v206 = vld [vmem:[%s148 + $0x1c0] sm:$0xff]
                %207 = vst [vmem:[%s149 + $0xe0] sm:$0xff] %v206
                %v208 = vld [vmem:[%s148 + $0x1c8] sm:$0xff]
                %209 = vst [vmem:[%s149 + $0xe8] sm:$0xff] %v208
                %v210 = vld [vmem:[%s148 + $0x1e0] sm:$0xff]
                %211 = vst [vmem:[%s149 + $0xf0] sm:$0xff] %v210
                %v212 = vld [vmem:[%s148 + $0x1e8] sm:$0xff]
                %213 = vst [vmem:[%s149 + $0xf8] sm:$0xff] %v212
                %v214 = vld [vmem:[%s148 + $0x200] sm:$0xff]
                %215 = vst [vmem:[%s149 + $0x100] sm:$0xff] %v214
                %v216 = vld [vmem:[%s148 + $0x208] sm:$0xff]
                %217 = vst [vmem:[%s149 + $0x108] sm:$0xff] %v216
                %v218 = vld [vmem:[%s148 + $0x220] sm:$0xff]
                %219 = vst [vmem:[%s149 + $0x110] sm:$0xff] %v218
                %v220 = vld [vmem:[%s148 + $0x228] sm:$0xff]
                %221 = vst [vmem:[%s149 + $0x118] sm:$0xff] %v220
                %v222 = vld [vmem:[%s148 + $0x240] sm:$0xff]
                %223 = vst [vmem:[%s149 + $0x120] sm:$0xff] %v222
                %v224 = vld [vmem:[%s148 + $0x248] sm:$0xff]
                %225 = vst [vmem:[%s149 + $0x128] sm:$0xff] %v224
                %v226 = vld [vmem:[%s148 + $0x260] sm:$0xff]
                %227 = vst [vmem:[%s149 + $0x130] sm:$0xff] %v226
                %v228 = vld [vmem:[%s148 + $0x268] sm:$0xff]
                %229 = vst [vmem:[%s149 + $0x138] sm:$0xff] %v228
                %v230 = vld [vmem:[%s148 + $0x280] sm:$0xff]
                %231 = vst [vmem:[%s149 + $0x140] sm:$0xff] %v230
                %v232 = vld [vmem:[%s148 + $0x288] sm:$0xff]
                %233 = vst [vmem:[%s149 + $0x148] sm:$0xff] %v232
                %v234 = vld [vmem:[%s148 + $0x2a0] sm:$0xff]
                %235 = vst [vmem:[%s149 + $0x150] sm:$0xff] %v234
                %v236 = vld [vmem:[%s148 + $0x2a8] sm:$0xff]
                %237 = vst [vmem:[%s149 + $0x158] sm:$0xff] %v236
                %v238 = vld [vmem:[%s148 + $0x2c0] sm:$0xff]
                %239 = vst [vmem:[%s149 + $0x160] sm:$0xff] %v238
                %v240 = vld [vmem:[%s148 + $0x2c8] sm:$0xff]
                %241 = vst [vmem:[%s149 + $0x168] sm:$0xff] %v240
                %v242 = vld [vmem:[%s148 + $0x2e0] sm:$0xff]
                %243 = vst [vmem:[%s149 + $0x170] sm:$0xff] %v242
                %v244 = vld [vmem:[%s148 + $0x2e8] sm:$0xff]
                %245 = vst [vmem:[%s149 + $0x178] sm:$0xff] %v244
                %v246 = vld [vmem:[%s148 + $0x300] sm:$0xff]
                %247 = vst [vmem:[%s149 + $0x180] sm:$0xff] %v246
                %v248 = vld [vmem:[%s148 + $0x308] sm:$0xff]
                %249 = vst [vmem:[%s149 + $0x188] sm:$0xff] %v248
                %v250 = vld [vmem:[%s148 + $0x320] sm:$0xff]
                %251 = vst [vmem:[%s149 + $0x190] sm:$0xff] %v250
                %v252 = vld [vmem:[%s148 + $0x328] sm:$0xff]
                %253 = vst [vmem:[%s149 + $0x198] sm:$0xff] %v252
                %v254 = vld [vmem:[%s148 + $0x340] sm:$0xff]
                %255 = vst [vmem:[%s149 + $0x1a0] sm:$0xff] %v254
                %v256 = vld [vmem:[%s148 + $0x348] sm:$0xff]
                %257 = vst [vmem:[%s149 + $0x1a8] sm:$0xff] %v256
                %v258 = vld [vmem:[%s148 + $0x360] sm:$0xff]
                %259 = vst [vmem:[%s149 + $0x1b0] sm:$0xff] %v258
                %v260 = vld [vmem:[%s148 + $0x368] sm:$0xff]
                %261 = vst [vmem:[%s149 + $0x1b8] sm:$0xff] %v260
                %v262 = vld [vmem:[%s148 + $0x380] sm:$0xff]
                %263 = vst [vmem:[%s149 + $0x1c0] sm:$0xff] %v262
                %v264 = vld [vmem:[%s148 + $0x388] sm:$0xff]
                %265 = vst [vmem:[%s149 + $0x1c8] sm:$0xff] %v264
                %v266 = vld [vmem:[%s148 + $0x3a0] sm:$0xff]
                %267 = vst [vmem:[%s149 + $0x1d0] sm:$0xff] %v266
                %v268 = vld [vmem:[%s148 + $0x3a8] sm:$0xff]
                %269 = vst [vmem:[%s149 + $0x1d8] sm:$0xff] %v268
                %v270 = vld [vmem:[%s148 + $0x3c0] sm:$0xff]
                %271 = vst [vmem:[%s149 + $0x1e0] sm:$0xff] %v270
                %v272 = vld [vmem:[%s148 + $0x3c8] sm:$0xff]
                %273 = vst [vmem:[%s149 + $0x1e8] sm:$0xff] %v272
                %v274 = vld [vmem:[%s148 + $0x3e0] sm:$0xff]
                %275 = vst [vmem:[%s149 + $0x1f0] sm:$0xff] %v274
                %v276 = vld [vmem:[%s148 + $0x3e8] sm:$0xff]
                %277 = vst [vmem:[%s149 + $0x1f8] sm:$0xff] %v276
              $region41: #{deepmind_forward.3} parent=35 // loop_footer
                %s147 = sadd.s32 1, %s143
              $region42: #{deepmind_forward.3} parent=35 // loop_footer_branch
                %142 = sbr.rel target = $region38
              $region43: #{deepmind_forward.3} parent=35 // loop_exit
                _
            $region36: #{deepmind_forward.3} parent=31 // pred_fallthru
              _
            // Predicated region
            $region44: #{deepmind_forward.3} parent=31 // pred_check
              _
            $region45: #{deepmind_forward.3} parent=31 // pred_check_branch
              %279 = sbr.rel target = $region47
            $region46: #{deepmind_forward.3} parent=31 // pred_region
              _
            $region47: #{deepmind_forward.3} parent=31 // pred_fallthru
              _
          $region32: #{deepmind_forward.3} parent=27 // pred_fallthru
            _
          %280 = vnop
        $region28: #{deepmind_forward.3} parent=23 // pred_fallthru
          _
      $region24: #{deepmind_forward.3} parent=5 // pred_fallthru
        _
      %p281 = scmp.le.s32.totalorder 1, %s9
      %p282 = scmp.lt.s32.totalorder %s9, 3
      %p283 = pnand %p281, %p282
      %p284 = pneg %p283
      // Predicated region
      $region48: #{deepmind_forward.3} parent=5 // pred_check
        _
      $region49: #{deepmind_forward.3} parent=5 // pred_check_branch
        %286 = sbr.rel (%p283) target = $region51
      $region50: #{deepmind_forward.3} parent=5 // pred_region
        %s287 = ssub.s32 %s9, 1
        %s288 = sand.u32 %s64, 1
        %s289 = sand.u32 %s64, 1
        %s290 = smul.addr %s289, 512
        %s291 = scalar_lea.vmem [#allocation2], %s290
        // Predicated region
        $region52: #{deepmind_forward.3} parent=50 // pred_check
          %p292 = pneg %p77
        $region53: #{deepmind_forward.3} parent=50 // pred_check_branch
          %294 = sbr.rel (%p292) target = $region55
        $region54: #{deepmind_forward.3} parent=50 // pred_region
          _
        $region55: #{deepmind_forward.3} parent=50 // pred_fallthru
          _
        %p295 = pneg %p30
        %p296 = pneg %p27
        %p297 = pneg %p51
        %p298 = pneg %p48
        %s299 = sand.u32 %s64, 1
        %s300 = sand.u32 %s64, 1
        %s301 = smul.addr %s300, 512
        %s302 = scalar_lea.vmem [#allocation2], %s301
        %p303 = pneg %p77
        %p304 = pneg %p74
        %p305 = pneg %p103
        %p306 = pneg %p100
        %s307 = sand.u32 %s90, 1
        %s308 = sand.u32 %s90, 1
        %s309 = smul.addr %s308, 64
        %s310 = scalar_lea.vmem [#allocation3], %s309
        %s311 = smul.u32 4, %s14
        %s312 = smul.u32 4, %s14
        %v313 = vld [vmem:[%s0] sm:$0xff]
        %v314 = vld [vmem:[%s0 + $0x8] sm:$0xff]
        %v315 = vld [vmem:[%s0 + $0x10] sm:$0xff]
        %v316 = vld [vmem:[%s0 + $0x18] sm:$0xff]
        %v317 = vld [vmem:[%s291] sm:$0xff]
        %v318 = vld [vmem:[%s291 + $0x8] sm:$0xff]
        %v319 = vld [vmem:[%s291 + $0x10] sm:$0xff]
        %v320 = vld [vmem:[%s291 + $0x18] sm:$0xff]
        %v321 = vld [vmem:[%s291 + $0x20] sm:$0xff]
        %v322 = vld [vmem:[%s291 + $0x28] sm:$0xff]
        %v323 = vld [vmem:[%s291 + $0x30] sm:$0xff]
        %v324 = vld [vmem:[%s291 + $0x38] sm:$0xff]
        %v325 = vld [vmem:[%s291 + $0x40] sm:$0xff]
        %v326 = vld [vmem:[%s291 + $0x48] sm:$0xff]
        %v327 = vld [vmem:[%s291 + $0x50] sm:$0xff]
        %v328 = vld [vmem:[%s291 + $0x58] sm:$0xff]
        %v329 = vld [vmem:[%s291 + $0x60] sm:$0xff]
        %v330 = vld [vmem:[%s291 + $0x68] sm:$0xff]
        %v331 = vld [vmem:[%s291 + $0x70] sm:$0xff]
        %v332 = vld [vmem:[%s291 + $0x78] sm:$0xff]
        %v333 = vld [vmem:[%s291 + $0x80] sm:$0xff]
        %v334 = vld [vmem:[%s291 + $0x88] sm:$0xff]
        %v335 = vld [vmem:[%s291 + $0x90] sm:$0xff]
        %v336 = vld [vmem:[%s291 + $0x98] sm:$0xff]
        %v337 = vld [vmem:[%s291 + $0xa0] sm:$0xff]
        %v338 = vld [vmem:[%s291 + $0xa8] sm:$0xff]
        %v339 = vld [vmem:[%s291 + $0xb0] sm:$0xff]
        %v340 = vld [vmem:[%s291 + $0xb8] sm:$0xff]
        %v341 = vld [vmem:[%s291 + $0xc0] sm:$0xff]
        %v342 = vld [vmem:[%s291 + $0xc8] sm:$0xff]
        %v343 = vld [vmem:[%s291 + $0xd0] sm:$0xff]
        %v344 = vld [vmem:[%s291 + $0xd8] sm:$0xff]
        %v345 = vld [vmem:[%s291 + $0xe0] sm:$0xff]
        %v346 = vld [vmem:[%s291 + $0xe8] sm:$0xff]
        %v347 = vld [vmem:[%s291 + $0xf0] sm:$0xff]
        %v348 = vld [vmem:[%s291 + $0xf8] sm:$0xff]
        %v349 = vld [vmem:[%s291 + $0x100] sm:$0xff]
        %v350 = vld [vmem:[%s291 + $0x108] sm:$0xff]
        %v351 = vld [vmem:[%s291 + $0x110] sm:$0xff]
        %v352 = vld [vmem:[%s291 + $0x118] sm:$0xff]
        %v353 = vld [vmem:[%s291 + $0x120] sm:$0xff]
        %v354 = vld [vmem:[%s291 + $0x128] sm:$0xff]
        %v355 = vld [vmem:[%s291 + $0x130] sm:$0xff]
        %v356 = vld [vmem:[%s291 + $0x138] sm:$0xff]
        %v357 = vld [vmem:[%s291 + $0x140] sm:$0xff]
        %v358 = vld [vmem:[%s291 + $0x148] sm:$0xff]
        %v359 = vld [vmem:[%s291 + $0x150] sm:$0xff]
        %v360 = vld [vmem:[%s291 + $0x158] sm:$0xff]
        %v361 = vld [vmem:[%s291 + $0x160] sm:$0xff]
        %v362 = vld [vmem:[%s291 + $0x168] sm:$0xff]
        %v363 = vld [vmem:[%s291 + $0x170] sm:$0xff]
        %v364 = vld [vmem:[%s291 + $0x178] sm:$0xff]
        %v365 = vld [vmem:[%s291 + $0x180] sm:$0xff]
        %v366 = vld [vmem:[%s291 + $0x188] sm:$0xff]
        %v367 = vld [vmem:[%s291 + $0x190] sm:$0xff]
        %v368 = vld [vmem:[%s291 + $0x198] sm:$0xff]
        %v369 = vld [vmem:[%s291 + $0x1a0] sm:$0xff]
        %v370 = vld [vmem:[%s291 + $0x1a8] sm:$0xff]
        %v371 = vld [vmem:[%s291 + $0x1b0] sm:$0xff]
        %v372 = vld [vmem:[%s291 + $0x1b8] sm:$0xff]
        %v373 = vld [vmem:[%s291 + $0x1c0] sm:$0xff]
        %v374 = vld [vmem:[%s291 + $0x1c8] sm:$0xff]
        %v375 = vld [vmem:[%s291 + $0x1d0] sm:$0xff]
        %v376 = vld [vmem:[%s291 + $0x1d8] sm:$0xff]
        %v377 = vld [vmem:[%s291 + $0x1e0] sm:$0xff]
        %v378 = vld [vmem:[%s291 + $0x1e8] sm:$0xff]
        %v379 = vld [vmem:[%s291 + $0x1f0] sm:$0xff]
        %v380 = vld [vmem:[%s291 + $0x1f8] sm:$0xff]
        %v381 = vld [vmem:[%s1] sm:$0xff]
        %v382 = vld [vmem:[%s1 + $0x8] sm:$0xff]
        %v383 = vld [vmem:[%s1 + $0x10] sm:$0xff]
        %v384 = vld [vmem:[%s1 + $0x18] sm:$0xff]
        %386 = vset.pattern.permute.xlu0 0
        %387 = vperm.xlu0 %386, %v381
        %v388 = vpop.permute.xlu0 %387
        %391 = vset.pattern.permute.xlu0 0
        %392 = vperm.xlu0 %391, %v382
        %v393 = vpop.permute.xlu0 %392
        %396 = vset.pattern.permute.xlu0 0
        %397 = vperm.xlu0 %396, %v383
        %v398 = vpop.permute.xlu0 %397
        %401 = vset.pattern.permute.xlu0 0
        %402 = vperm.xlu0 %401, %v384
        %v403 = vpop.permute.xlu0 %402
        %v409 = vunpack.c.l.b16 %v313
        %v410 = vunpack.c.h.b16 %v313
        %v411 = vunpack.c.l.b16 %v314
        %v412 = vunpack.c.h.b16 %v314
        %v413 = vunpack.c.l.b16 %v315
        %v414 = vunpack.c.h.b16 %v315
        %v415 = vunpack.c.l.b16 %v316
        %v416 = vunpack.c.h.b16 %v316
        %v417 = vpack.c.b16 %v411, %v409
        %v418 = vpack.c.b16 %v412, %v410
        %v419 = vpack.c.b16 %v415, %v413
        %v420 = vpack.c.b16 %v416, %v414
        %v489 = vunpack.c.l.b16 %v317
        %v490 = vunpack.c.h.b16 %v317
        %v491 = vunpack.c.l.b16 %v318
        %v492 = vunpack.c.h.b16 %v318
        %v493 = vunpack.c.l.b16 %v319
        %v494 = vunpack.c.h.b16 %v319
        %v495 = vunpack.c.l.b16 %v320
        %v496 = vunpack.c.h.b16 %v320
        %v497 = vunpack.c.l.b16 %v321
        %v498 = vunpack.c.h.b16 %v321
        %v499 = vunpack.c.l.b16 %v322
        %v500 = vunpack.c.h.b16 %v322
        %v501 = vunpack.c.l.b16 %v323
        %v502 = vunpack.c.h.b16 %v323
        %v503 = vunpack.c.l.b16 %v324
        %v504 = vunpack.c.h.b16 %v324
        %v505 = vunpack.c.l.b16 %v325
        %v506 = vunpack.c.h.b16 %v325
        %v507 = vunpack.c.l.b16 %v326
        %v508 = vunpack.c.h.b16 %v326
        %v509 = vunpack.c.l.b16 %v327
        %v510 = vunpack.c.h.b16 %v327
        %v511 = vunpack.c.l.b16 %v328
        %v512 = vunpack.c.h.b16 %v328
        %v513 = vunpack.c.l.b16 %v329
        %v514 = vunpack.c.h.b16 %v329
        %v515 = vunpack.c.l.b16 %v330
        %v516 = vunpack.c.h.b16 %v330
        %v517 = vunpack.c.l.b16 %v331
        %v518 = vunpack.c.h.b16 %v331
        %v519 = vunpack.c.l.b16 %v332
        %v520 = vunpack.c.h.b16 %v332
        %v521 = vunpack.c.l.b16 %v333
        %v522 = vunpack.c.h.b16 %v333
        %v523 = vunpack.c.l.b16 %v334
        %v524 = vunpack.c.h.b16 %v334
        %v525 = vunpack.c.l.b16 %v335
        %v526 = vunpack.c.h.b16 %v335
        %v527 = vunpack.c.l.b16 %v336
        %v528 = vunpack.c.h.b16 %v336
        %v529 = vunpack.c.l.b16 %v337
        %v530 = vunpack.c.h.b16 %v337
        %v531 = vunpack.c.l.b16 %v338
        %v532 = vunpack.c.h.b16 %v338
        %v533 = vunpack.c.l.b16 %v339
        %v534 = vunpack.c.h.b16 %v339
        %v535 = vunpack.c.l.b16 %v340
        %v536 = vunpack.c.h.b16 %v340
        %v537 = vunpack.c.l.b16 %v341
        %v538 = vunpack.c.h.b16 %v341
        %v539 = vunpack.c.l.b16 %v342
        %v540 = vunpack.c.h.b16 %v342
        %v541 = vunpack.c.l.b16 %v343
        %v542 = vunpack.c.h.b16 %v343
        %v543 = vunpack.c.l.b16 %v344
        %v544 = vunpack.c.h.b16 %v344
        %v545 = vunpack.c.l.b16 %v345
        %v546 = vunpack.c.h.b16 %v345
        %v547 = vunpack.c.l.b16 %v346
        %v548 = vunpack.c.h.b16 %v346
        %v549 = vunpack.c.l.b16 %v347
        %v550 = vunpack.c.h.b16 %v347
        %v551 = vunpack.c.l.b16 %v348
        %v552 = vunpack.c.h.b16 %v348
        %v553 = vunpack.c.l.b16 %v349
        %v554 = vunpack.c.h.b16 %v349
        %v555 = vunpack.c.l.b16 %v350
        %v556 = vunpack.c.h.b16 %v350
        %v557 = vunpack.c.l.b16 %v351
        %v558 = vunpack.c.h.b16 %v351
        %v559 = vunpack.c.l.b16 %v352
        %v560 = vunpack.c.h.b16 %v352
        %v561 = vunpack.c.l.b16 %v353
        %v562 = vunpack.c.h.b16 %v353
        %v563 = vunpack.c.l.b16 %v354
        %v564 = vunpack.c.h.b16 %v354
        %v565 = vunpack.c.l.b16 %v355
        %v566 = vunpack.c.h.b16 %v355
        %v567 = vunpack.c.l.b16 %v356
        %v568 = vunpack.c.h.b16 %v356
        %v569 = vunpack.c.l.b16 %v357
        %v570 = vunpack.c.h.b16 %v357
        %v571 = vunpack.c.l.b16 %v358
        %v572 = vunpack.c.h.b16 %v358
        %v573 = vunpack.c.l.b16 %v359
        %v574 = vunpack.c.h.b16 %v359
        %v575 = vunpack.c.l.b16 %v360
        %v576 = vunpack.c.h.b16 %v360
        %v577 = vunpack.c.l.b16 %v361
        %v578 = vunpack.c.h.b16 %v361
        %v579 = vunpack.c.l.b16 %v362
        %v580 = vunpack.c.h.b16 %v362
        %v581 = vunpack.c.l.b16 %v363
        %v582 = vunpack.c.h.b16 %v363
        %v583 = vunpack.c.l.b16 %v364
        %v584 = vunpack.c.h.b16 %v364
        %v585 = vunpack.c.l.b16 %v365
        %v586 = vunpack.c.h.b16 %v365
        %v587 = vunpack.c.l.b16 %v366
        %v588 = vunpack.c.h.b16 %v366
        %v589 = vunpack.c.l.b16 %v367
        %v590 = vunpack.c.h.b16 %v367
        %v591 = vunpack.c.l.b16 %v368
        %v592 = vunpack.c.h.b16 %v368
        %v593 = vunpack.c.l.b16 %v369
        %v594 = vunpack.c.h.b16 %v369
        %v595 = vunpack.c.l.b16 %v370
        %v596 = vunpack.c.h.b16 %v370
        %v597 = vunpack.c.l.b16 %v371
        %v598 = vunpack.c.h.b16 %v371
        %v599 = vunpack.c.l.b16 %v372
        %v600 = vunpack.c.h.b16 %v372
        %v601 = vunpack.c.l.b16 %v373
        %v602 = vunpack.c.h.b16 %v373
        %v603 = vunpack.c.l.b16 %v374
        %v604 = vunpack.c.h.b16 %v374
        %v605 = vunpack.c.l.b16 %v375
        %v606 = vunpack.c.h.b16 %v375
        %v607 = vunpack.c.l.b16 %v376
        %v608 = vunpack.c.h.b16 %v376
        %v609 = vunpack.c.l.b16 %v377
        %v610 = vunpack.c.h.b16 %v377
        %v611 = vunpack.c.l.b16 %v378
        %v612 = vunpack.c.h.b16 %v378
        %v613 = vunpack.c.l.b16 %v379
        %v614 = vunpack.c.h.b16 %v379
        %v615 = vunpack.c.l.b16 %v380
        %v616 = vunpack.c.h.b16 %v380
        %v617 = vpack.c.b16 %v493, %v489
        %v618 = vpack.c.b16 %v494, %v490
        %v619 = vpack.c.b16 %v495, %v491
        %v620 = vpack.c.b16 %v496, %v492
        %v621 = vpack.c.b16 %v501, %v497
        %v622 = vpack.c.b16 %v502, %v498
        %v623 = vpack.c.b16 %v503, %v499
        %v624 = vpack.c.b16 %v504, %v500
        %v625 = vpack.c.b16 %v509, %v505
        %v626 = vpack.c.b16 %v510, %v506
        %v627 = vpack.c.b16 %v511, %v507
        %v628 = vpack.c.b16 %v512, %v508
        %v629 = vpack.c.b16 %v517, %v513
        %v630 = vpack.c.b16 %v518, %v514
        %v631 = vpack.c.b16 %v519, %v515
        %v632 = vpack.c.b16 %v520, %v516
        %v633 = vpack.c.b16 %v525, %v521
        %v634 = vpack.c.b16 %v526, %v522
        %v635 = vpack.c.b16 %v527, %v523
        %v636 = vpack.c.b16 %v528, %v524
        %v637 = vpack.c.b16 %v533, %v529
        %v638 = vpack.c.b16 %v534, %v530
        %v639 = vpack.c.b16 %v535, %v531
        %v640 = vpack.c.b16 %v536, %v532
        %v641 = vpack.c.b16 %v541, %v537
        %v642 = vpack.c.b16 %v542, %v538
        %v643 = vpack.c.b16 %v543, %v539
        %v644 = vpack.c.b16 %v544, %v540
        %v645 = vpack.c.b16 %v549, %v545
        %v646 = vpack.c.b16 %v550, %v546
        %v647 = vpack.c.b16 %v551, %v547
        %v648 = vpack.c.b16 %v552, %v548
        %v649 = vpack.c.b16 %v557, %v553
        %v650 = vpack.c.b16 %v558, %v554
        %v651 = vpack.c.b16 %v559, %v555
        %v652 = vpack.c.b16 %v560, %v556
        %v653 = vpack.c.b16 %v565, %v561
        %v654 = vpack.c.b16 %v566, %v562
        %v655 = vpack.c.b16 %v567, %v563
        %v656 = vpack.c.b16 %v568, %v564
        %v657 = vpack.c.b16 %v573, %v569
        %v658 = vpack.c.b16 %v574, %v570
        %v659 = vpack.c.b16 %v575, %v571
        %v660 = vpack.c.b16 %v576, %v572
        %v661 = vpack.c.b16 %v581, %v577
        %v662 = vpack.c.b16 %v582, %v578
        %v663 = vpack.c.b16 %v583, %v579
        %v664 = vpack.c.b16 %v584, %v580
        %v665 = vpack.c.b16 %v589, %v585
        %v666 = vpack.c.b16 %v590, %v586
        %v667 = vpack.c.b16 %v591, %v587
        %v668 = vpack.c.b16 %v592, %v588
        %v669 = vpack.c.b16 %v597, %v593
        %v670 = vpack.c.b16 %v598, %v594
        %v671 = vpack.c.b16 %v599, %v595
        %v672 = vpack.c.b16 %v600, %v596
        %v673 = vpack.c.b16 %v605, %v601
        %v674 = vpack.c.b16 %v606, %v602
        %v675 = vpack.c.b16 %v607, %v603
        %v676 = vpack.c.b16 %v608, %v604
        %v677 = vpack.c.b16 %v613, %v609
        %v678 = vpack.c.b16 %v614, %v610
        %v679 = vpack.c.b16 %v615, %v611
        %v680 = vpack.c.b16 %v616, %v612
        %745 = vmatpush.bf16.msra.mxu0 %v645
        %746 = vmatpush.bf16.msra.mxu0 %v641
        %747 = vmatpush.bf16.msra.mxu0 %v637
        %748 = vmatpush.bf16.msra.mxu0 %v633
        %749 = vmatpush.bf16.msra.mxu0 %v629
        %750 = vmatpush.bf16.msra.mxu0 %v625
        %751 = vmatpush.bf16.msra.mxu0 %v621
        %752 = vmatpush.bf16.msra.mxu0 %v617
        %753 = vmatmul.bf16.gmra.mxu0 %v417
        %v754 = vpop.f32.mrf.mxu0
        %v755 = vadd.f32 %v388, %v754
        %v756 = vpop.f32.mrf.mxu0
        %v757 = vadd.f32 %v393, %v756
        %758 = vmatmul.bf16.gmra.mxu0 %v419
        %v759 = vpop.f32.mrf.mxu0
        %v760 = vadd.f32 %v398, %v759
        %v761 = vpop.f32.mrf.mxu0
        %v762 = vadd.f32 %v403, %v761
        %763 = vdwg.mxu0
        %764 = vmatpush.bf16.msra.mxu0 %v677
        %765 = vmatpush.bf16.msra.mxu0 %v673
        %766 = vmatpush.bf16.msra.mxu0 %v669
        %767 = vmatpush.bf16.msra.mxu0 %v665
        %768 = vmatpush.bf16.msra.mxu0 %v661
        %769 = vmatpush.bf16.msra.mxu0 %v657
        %770 = vmatpush.bf16.msra.mxu0 %v653
        %771 = vmatpush.bf16.msra.mxu0 %v649
        %772 = vmatmul.bf16.gmra.mxu0 %v418
        %v773 = vpop.f32.mrf.mxu0
        %v774 = vadd.f32 %v755, %v773
        %v775 = vpop.f32.mrf.mxu0
        %v776 = vadd.f32 %v757, %v775
        %777 = vmatmul.bf16.gmra.mxu0 %v420
        %v778 = vpop.f32.mrf.mxu0
        %v779 = vadd.f32 %v760, %v778
        %v780 = vpop.f32.mrf.mxu0
        %v781 = vadd.f32 %v762, %v780
        %782 = vdwg.mxu0
        %783 = vmatpush.bf16.msra.mxu0 %v646
        %784 = vmatpush.bf16.msra.mxu0 %v642
        %785 = vmatpush.bf16.msra.mxu0 %v638
        %786 = vmatpush.bf16.msra.mxu0 %v634
        %787 = vmatpush.bf16.msra.mxu0 %v630
        %788 = vmatpush.bf16.msra.mxu0 %v626
        %789 = vmatpush.bf16.msra.mxu0 %v622
        %790 = vmatpush.bf16.msra.mxu0 %v618
        %791 = vmatmul.bf16.gmra.mxu0 %v417
        %v792 = vpop.f32.mrf.mxu0
        %v793 = vadd.f32 %v388, %v792
        %v794 = vpop.f32.mrf.mxu0
        %v795 = vadd.f32 %v393, %v794
        %796 = vmatmul.bf16.gmra.mxu0 %v419
        %v797 = vpop.f32.mrf.mxu0
        %v798 = vadd.f32 %v398, %v797
        %v799 = vpop.f32.mrf.mxu0
        %v800 = vadd.f32 %v403, %v799
        %801 = vdwg.mxu0
        %802 = vmatpush.bf16.msra.mxu0 %v678
        %803 = vmatpush.bf16.msra.mxu0 %v674
        %804 = vmatpush.bf16.msra.mxu0 %v670
        %805 = vmatpush.bf16.msra.mxu0 %v666
        %806 = vmatpush.bf16.msra.mxu0 %v662
        %807 = vmatpush.bf16.msra.mxu0 %v658
        %808 = vmatpush.bf16.msra.mxu0 %v654
        %809 = vmatpush.bf16.msra.mxu0 %v650
        %810 = vmatmul.bf16.gmra.mxu0 %v418
        %v811 = vpop.f32.mrf.mxu0
        %v812 = vadd.f32 %v793, %v811
        %v813 = vpop.f32.mrf.mxu0
        %v814 = vadd.f32 %v795, %v813
        %815 = vmatmul.bf16.gmra.mxu0 %v420
        %v816 = vpop.f32.mrf.mxu0
        %v817 = vadd.f32 %v798, %v816
        %v818 = vpop.f32.mrf.mxu0
        %v819 = vadd.f32 %v800, %v818
        %820 = vdwg.mxu0
        %821 = vmatpush.bf16.msra.mxu0 %v647
        %822 = vmatpush.bf16.msra.mxu0 %v643
        %823 = vmatpush.bf16.msra.mxu0 %v639
        %824 = vmatpush.bf16.msra.mxu0 %v635
        %825 = vmatpush.bf16.msra.mxu0 %v631
        %826 = vmatpush.bf16.msra.mxu0 %v627
        %827 = vmatpush.bf16.msra.mxu0 %v623
        %828 = vmatpush.bf16.msra.mxu0 %v619
        %829 = vmatmul.bf16.gmra.mxu0 %v417
        %v830 = vpop.f32.mrf.mxu0
        %v831 = vadd.f32 %v388, %v830
        %v832 = vpop.f32.mrf.mxu0
        %v833 = vadd.f32 %v393, %v832
        %834 = vmatmul.bf16.gmra.mxu0 %v419
        %v835 = vpop.f32.mrf.mxu0
        %v836 = vadd.f32 %v398, %v835
        %v837 = vpop.f32.mrf.mxu0
        %v838 = vadd.f32 %v403, %v837
        %839 = vdwg.mxu0
        %840 = vmatpush.bf16.msra.mxu0 %v679
        %841 = vmatpush.bf16.msra.mxu0 %v675
        %842 = vmatpush.bf16.msra.mxu0 %v671
        %843 = vmatpush.bf16.msra.mxu0 %v667
        %844 = vmatpush.bf16.msra.mxu0 %v663
        %845 = vmatpush.bf16.msra.mxu0 %v659
        %846 = vmatpush.bf16.msra.mxu0 %v655
        %847 = vmatpush.bf16.msra.mxu0 %v651
        %848 = vmatmul.bf16.gmra.mxu0 %v418
        %v849 = vpop.f32.mrf.mxu0
        %v850 = vadd.f32 %v831, %v849
        %v851 = vpop.f32.mrf.mxu0
        %v852 = vadd.f32 %v833, %v851
        %853 = vmatmul.bf16.gmra.mxu0 %v420
        %v854 = vpop.f32.mrf.mxu0
        %v855 = vadd.f32 %v836, %v854
        %v856 = vpop.f32.mrf.mxu0
        %v857 = vadd.f32 %v838, %v856
        %858 = vdwg.mxu0
        %859 = vmatpush.bf16.msra.mxu0 %v648
        %860 = vmatpush.bf16.msra.mxu0 %v644
        %861 = vmatpush.bf16.msra.mxu0 %v640
        %862 = vmatpush.bf16.msra.mxu0 %v636
        %863 = vmatpush.bf16.msra.mxu0 %v632
        %864 = vmatpush.bf16.msra.mxu0 %v628
        %865 = vmatpush.bf16.msra.mxu0 %v624
        %866 = vmatpush.bf16.msra.mxu0 %v620
        %867 = vmatmul.bf16.gmra.mxu0 %v417
        %v868 = vpop.f32.mrf.mxu0
        %v869 = vadd.f32 %v388, %v868
        %v870 = vpop.f32.mrf.mxu0
        %v871 = vadd.f32 %v393, %v870
        %872 = vmatmul.bf16.gmra.mxu0 %v419
        %v873 = vpop.f32.mrf.mxu0
        %v874 = vadd.f32 %v398, %v873
        %v875 = vpop.f32.mrf.mxu0
        %v876 = vadd.f32 %v403, %v875
        %877 = vdwg.mxu0
        %878 = vmatpush.bf16.msra.mxu0 %v680
        %879 = vmatpush.bf16.msra.mxu0 %v676
        %880 = vmatpush.bf16.msra.mxu0 %v672
        %881 = vmatpush.bf16.msra.mxu0 %v668
        %882 = vmatpush.bf16.msra.mxu0 %v664
        %883 = vmatpush.bf16.msra.mxu0 %v660
        %884 = vmatpush.bf16.msra.mxu0 %v656
        %885 = vmatpush.bf16.msra.mxu0 %v652
        %886 = vmatmul.bf16.gmra.mxu0 %v418
        %v887 = vpop.f32.mrf.mxu0
        %v888 = vadd.f32 %v869, %v887
        %v889 = vpop.f32.mrf.mxu0
        %v890 = vadd.f32 %v871, %v889
        %891 = vmatmul.bf16.gmra.mxu0 %v420
        %v892 = vpop.f32.mrf.mxu0
        %v893 = vadd.f32 %v874, %v892
        %v894 = vpop.f32.mrf.mxu0
        %v895 = vadd.f32 %v876, %v894
        %896 = vdwg.mxu0
        %v897 = vmax.f32 %v774, 0.0
        %v898 = vmax.f32 %v812, 0.0
        %v899 = vmax.f32 %v850, 0.0
        %v900 = vmax.f32 %v888, 0.0
        %v901 = vmax.f32 %v776, 0.0
        %v902 = vmax.f32 %v814, 0.0
        %v903 = vmax.f32 %v852, 0.0
        %v904 = vmax.f32 %v890, 0.0
        %v905 = vmax.f32 %v779, 0.0
        %v906 = vmax.f32 %v817, 0.0
        %v907 = vmax.f32 %v855, 0.0
        %v908 = vmax.f32 %v893, 0.0
        %v909 = vmax.f32 %v781, 0.0
        %v910 = vmax.f32 %v819, 0.0
        %v911 = vmax.f32 %v857, 0.0
        %v912 = vmax.f32 %v895, 0.0
        %v913 = vpack.c.bf16 %v898, %v897
        %v914 = vpack.c.bf16 %v900, %v899
        %v915 = vpack.c.bf16 %v902, %v901
        %v916 = vpack.c.bf16 %v904, %v903
        %v917 = vpack.c.bf16 %v906, %v905
        %v918 = vpack.c.bf16 %v908, %v907
        %v919 = vpack.c.bf16 %v910, %v909
        %v920 = vpack.c.bf16 %v912, %v911
        %921 = vst [vmem:[%s310] sm:$0xff] %v913
        %922 = vst [vmem:[%s310 + $0x8] sm:$0xff] %v914
        %923 = vst [vmem:[%s310 + $0x10] sm:$0xff] %v915
        %924 = vst [vmem:[%s310 + $0x18] sm:$0xff] %v916
        %925 = vst [vmem:[%s310 + $0x20] sm:$0xff] %v917
        %926 = vst [vmem:[%s310 + $0x28] sm:$0xff] %v918
        %927 = vst [vmem:[%s310 + $0x30] sm:$0xff] %v919
        %928 = vst [vmem:[%s310 + $0x38] sm:$0xff] %v920
        %s929 = sand.u32 %s90, 1
        %s930 = sand.u32 %s90, 1
        %s931 = smul.addr %s930, 64
        %s932 = scalar_lea.vmem [#allocation3], %s931
        // Predicated region
        $region56: #{deepmind_forward.3} parent=50 // pred_check
          %p933 = pneg %p100
        $region57: #{deepmind_forward.3} parent=50 // pred_check_branch
          %935 = sbr.rel (%p933) target = $region59
        $region58: #{deepmind_forward.3} parent=50 // pred_region
          %s936 = smul.u32 4, %s14
          %s937 = smul.addr %s936, 4
          %s938 = scalar_lea.vmem %s3, %s937
          // Predicated region
          $region60: #{deepmind_forward.3} parent=58 // pred_check
            _
          $region61: #{deepmind_forward.3} parent=58 // pred_check_branch
            %940 = sbr.rel (0) target = $region63
          $region62: #{deepmind_forward.3} parent=58 // pred_region
            // Predicated region
            $region64: #{deepmind_forward.3} parent=62 // pred_check
              _
            $region65: #{deepmind_forward.3} parent=62 // pred_check_branch
              %942 = sbr.rel (0) target = $region67
            $region66: #{deepmind_forward.3} parent=62 // pred_region
              loop: start=0, step=1, limit=1
              $region68: #{deepmind_forward.3} parent=66 // loop_pre_header
                _
              $region69: #{deepmind_forward.3} parent=66 // loop_header
                %s944 = sphi 0, %s948
                %p945 = scmp.ge.s32.totalorder %s944, 1
                %s949 = sphi %s932, %s932
                %s950 = sphi %s938, %s938
              $region70: #{deepmind_forward.3} parent=66 // loop_header_branch
                %947 = sbr.rel (%p945) target = $region74
              $region71: #{deepmind_forward.3} parent=66 // loop_body
                %v951 = vld [vmem:[%s949] sm:$0xff]
                %952 = vst [vmem:[%s950] sm:$0xff] %v951
                %v953 = vld [vmem:[%s949 + $0x8] sm:$0xff]
                %954 = vst [vmem:[%s950 + $0x8] sm:$0xff] %v953
                %v955 = vld [vmem:[%s949 + $0x10] sm:$0xff]
                %956 = vst [vmem:[%s950 + $0x20] sm:$0xff] %v955
                %v957 = vld [vmem:[%s949 + $0x18] sm:$0xff]
                %958 = vst [vmem:[%s950 + $0x28] sm:$0xff] %v957
                %v959 = vld [vmem:[%s949 + $0x20] sm:$0xff]
                %960 = vst [vmem:[%s950 + $0x40] sm:$0xff] %v959
                %v961 = vld [vmem:[%s949 + $0x28] sm:$0xff]
                %962 = vst [vmem:[%s950 + $0x48] sm:$0xff] %v961
                %v963 = vld [vmem:[%s949 + $0x30] sm:$0xff]
                %964 = vst [vmem:[%s950 + $0x60] sm:$0xff] %v963
                %v965 = vld [vmem:[%s949 + $0x38] sm:$0xff]
                %966 = vst [vmem:[%s950 + $0x68] sm:$0xff] %v965
              $region72: #{deepmind_forward.3} parent=66 // loop_footer
                %s948 = sadd.s32 1, %s944
              $region73: #{deepmind_forward.3} parent=66 // loop_footer_branch
                %943 = sbr.rel target = $region69
              $region74: #{deepmind_forward.3} parent=66 // loop_exit
                _
            $region67: #{deepmind_forward.3} parent=62 // pred_fallthru
              _
            // Predicated region
            $region75: #{deepmind_forward.3} parent=62 // pred_check
              _
            $region76: #{deepmind_forward.3} parent=62 // pred_check_branch
              %968 = sbr.rel target = $region78
            $region77: #{deepmind_forward.3} parent=62 // pred_region
              _
            $region78: #{deepmind_forward.3} parent=62 // pred_fallthru
              _
          $region63: #{deepmind_forward.3} parent=58 // pred_fallthru
            _
          %969 = vnop
        $region59: #{deepmind_forward.3} parent=50 // pred_fallthru
          _
      $region51: #{deepmind_forward.3} parent=5 // pred_fallthru
        _
      %p970 = scmp.le.s32.totalorder 2, %s9
      // Predicated region
      $region79: #{deepmind_forward.3} parent=5 // pred_check
        %p971 = pneg %p970
      $region80: #{deepmind_forward.3} parent=5 // pred_check_branch
        %973 = sbr.rel (%p971) target = $region82
      $region81: #{deepmind_forward.3} parent=5 // pred_region
        %s974 = ssub.s32 %s9, 2
        // Predicated region
        $region83: #{deepmind_forward.3} parent=81 // pred_check
          %p975 = pneg %p106
        $region84: #{deepmind_forward.3} parent=81 // pred_check_branch
          %977 = sbr.rel (%p975) target = $region86
        $region85: #{deepmind_forward.3} parent=81 // pred_region
          %s978 = sand.u32 %s91, 1
          %s979 = sand.u32 %s91, 1
          %s980 = smul.addr %s979, 64
          %s981 = scalar_lea.vmem [#allocation3], %s980
        $region86: #{deepmind_forward.3} parent=81 // pred_fallthru
          _
      $region82: #{deepmind_forward.3} parent=5 // pred_fallthru
        _
    $region6: #{deepmind_forward.3} parent=1 // loop_footer
      %s13 = sadd.s32 1, %s9
    $region7: #{deepmind_forward.3} parent=1 // loop_footer_branch
      %8 = sbr.rel target = $region3
    $region8: #{deepmind_forward.3} parent=1 // loop_exit
      _

// kernel: deepmind_forward.4
$region0: #{deepmind_forward.4}
  #allocation0 [shape = 'u32[]', space=smem, size = 0x4, offset = 0x4, fixed_abs, tag = 'smem constant byte address 0x4 - core index']
  #allocation1 [shape = 'u32[72,128]{1,0:T(1,128)}', space=vmem, size = 0x9000, scoped, tag = 'internal scratch']
  %s0 = inlined_call_operand.vmem [shape: bf16[64,512], index: 0, kind: input, shape index: {}]
  %s1 = inlined_call_operand.vmem [shape: f32[64,1], index: 1, kind: input, shape index: {}]
  %s2 = inlined_call_operand.vmem [shape: bf16[512,256], index: 2, kind: input, shape index: {}]
  %s3 = inlined_call_operand.vmem [shape: bf16[64,256], index: 3, kind: output, shape index: {}]
  %s4 = sld [smem:[#allocation0]]
  $region22: #{deepmind_forward.4} parent=0
    _
  %s6 = ssub.s32 1, %s4
  %s7 = scalar_select 0, %s6, %s4
  // Predicated region
  $region2: #{deepmind_forward.4} parent=0 // pred_check
    _
  $region3: #{deepmind_forward.4} parent=0 // pred_check_branch
    %9 = sbr.rel (0) target = $region5
  $region4: #{deepmind_forward.4} parent=0 // pred_region
    _
  $region5: #{deepmind_forward.4} parent=0 // pred_fallthru
    _
  // Predicated region
  $region6: #{deepmind_forward.4} parent=0 // pred_check
    _
  $region7: #{deepmind_forward.4} parent=0 // pred_check_branch
    %11 = sbr.rel (0) target = $region9
  $region8: #{deepmind_forward.4} parent=0 // pred_region
    _
  $region9: #{deepmind_forward.4} parent=0 // pred_fallthru
    _
  // Predicated region
  $region10: #{deepmind_forward.4} parent=0 // pred_check
    _
  $region11: #{deepmind_forward.4} parent=0 // pred_check_branch
    %13 = sbr.rel (0) target = $region13
  $region12: #{deepmind_forward.4} parent=0 // pred_region
    _
  $region13: #{deepmind_forward.4} parent=0 // pred_fallthru
    _
  %v14 = vld [vmem:[%s0] sm:$0xff]
  %v15 = vld [vmem:[%s0 + $0x8] sm:$0xff]
  %v16 = vld [vmem:[%s0 + $0x10] sm:$0xff]
  %v17 = vld [vmem:[%s0 + $0x18] sm:$0xff]
  %v18 = vld [vmem:[%s0 + $0x20] sm:$0xff]
  %v19 = vld [vmem:[%s0 + $0x28] sm:$0xff]
  %v20 = vld [vmem:[%s0 + $0x30] sm:$0xff]
  %v21 = vld [vmem:[%s0 + $0x38] sm:$0xff]
  %v22 = vld [vmem:[%s0 + $0x40] sm:$0xff]
  %v23 = vld [vmem:[%s0 + $0x48] sm:$0xff]
  %v24 = vld [vmem:[%s0 + $0x50] sm:$0xff]
  %v25 = vld [vmem:[%s0 + $0x58] sm:$0xff]
  %v26 = vld [vmem:[%s0 + $0x60] sm:$0xff]
  %v27 = vld [vmem:[%s0 + $0x68] sm:$0xff]
  %v28 = vld [vmem:[%s0 + $0x70] sm:$0xff]
  %v29 = vld [vmem:[%s0 + $0x78] sm:$0xff]
  %v30 = vld [vmem:[%s2] sm:$0xff]
  %v31 = vld [vmem:[%s2 + $0x8] sm:$0xff]
  %v32 = vld [vmem:[%s2 + $0x10] sm:$0xff]
  %v33 = vld [vmem:[%s2 + $0x18] sm:$0xff]
  %v34 = vld [vmem:[%s2 + $0x20] sm:$0xff]
  %v35 = vld [vmem:[%s2 + $0x28] sm:$0xff]
  %v36 = vld [vmem:[%s2 + $0x30] sm:$0xff]
  %v37 = vld [vmem:[%s2 + $0x38] sm:$0xff]
  %v38 = vld [vmem:[%s2 + $0x40] sm:$0xff]
  %v39 = vld [vmem:[%s2 + $0x48] sm:$0xff]
  %v40 = vld [vmem:[%s2 + $0x50] sm:$0xff]
  %v41 = vld [vmem:[%s2 + $0x58] sm:$0xff]
  %v42 = vld [vmem:[%s2 + $0x60] sm:$0xff]
  %v43 = vld [vmem:[%s2 + $0x68] sm:$0xff]
  %v44 = vld [vmem:[%s2 + $0x70] sm:$0xff]
  %v45 = vld [vmem:[%s2 + $0x78] sm:$0xff]
  %v46 = vld [vmem:[%s2 + $0x80] sm:$0xff]
  %v47 = vld [vmem:[%s2 + $0x88] sm:$0xff]
  %v48 = vld [vmem:[%s2 + $0x90] sm:$0xff]
  %v49 = vld [vmem:[%s2 + $0x98] sm:$0xff]
  %v50 = vld [vmem:[%s2 + $0xa0] sm:$0xff]
  %v51 = vld [vmem:[%s2 + $0xa8] sm:$0xff]
  %v52 = vld [vmem:[%s2 + $0xb0] sm:$0xff]
  %v53 = vld [vmem:[%s2 + $0xb8] sm:$0xff]
  %v54 = vld [vmem:[%s2 + $0xc0] sm:$0xff]
  %v55 = vld [vmem:[%s2 + $0xc8] sm:$0xff]
  %v56 = vld [vmem:[%s2 + $0xd0] sm:$0xff]
  %v57 = vld [vmem:[%s2 + $0xd8] sm:$0xff]
  %v58 = vld [vmem:[%s2 + $0xe0] sm:$0xff]
  %v59 = vld [vmem:[%s2 + $0xe8] sm:$0xff]
  %v60 = vld [vmem:[%s2 + $0xf0] sm:$0xff]
  %v61 = vld [vmem:[%s2 + $0xf8] sm:$0xff]
  %v62 = vld [vmem:[%s2 + $0x100] sm:$0xff]
  %v63 = vld [vmem:[%s2 + $0x108] sm:$0xff]
  %v64 = vld [vmem:[%s2 + $0x110] sm:$0xff]
  %v65 = vld [vmem:[%s2 + $0x118] sm:$0xff]
  %v66 = vld [vmem:[%s2 + $0x120] sm:$0xff]
  %v67 = vld [vmem:[%s2 + $0x128] sm:$0xff]
  %v68 = vld [vmem:[%s2 + $0x130] sm:$0xff]
  %v69 = vld [vmem:[%s2 + $0x138] sm:$0xff]
  %v70 = vld [vmem:[%s2 + $0x140] sm:$0xff]
  %v71 = vld [vmem:[%s2 + $0x148] sm:$0xff]
  %v72 = vld [vmem:[%s2 + $0x150] sm:$0xff]
  %v73 = vld [vmem:[%s2 + $0x158] sm:$0xff]
  %v74 = vld [vmem:[%s2 + $0x160] sm:$0xff]
  %v75 = vld [vmem:[%s2 + $0x168] sm:$0xff]
  %v76 = vld [vmem:[%s2 + $0x170] sm:$0xff]
  %v77 = vld [vmem:[%s2 + $0x178] sm:$0xff]
  %v78 = vld [vmem:[%s2 + $0x180] sm:$0xff]
  %v79 = vld [vmem:[%s2 + $0x188] sm:$0xff]
  %v80 = vld [vmem:[%s2 + $0x190] sm:$0xff]
  %v81 = vld [vmem:[%s2 + $0x198] sm:$0xff]
  %v82 = vld [vmem:[%s2 + $0x1a0] sm:$0xff]
  %v83 = vld [vmem:[%s2 + $0x1a8] sm:$0xff]
  %v84 = vld [vmem:[%s2 + $0x1b0] sm:$0xff]
  %v85 = vld [vmem:[%s2 + $0x1b8] sm:$0xff]
  %v86 = vld [vmem:[%s2 + $0x1c0] sm:$0xff]
  %v87 = vld [vmem:[%s2 + $0x1c8] sm:$0xff]
  %v88 = vld [vmem:[%s2 + $0x1d0] sm:$0xff]
  %v89 = vld [vmem:[%s2 + $0x1d8] sm:$0xff]
  %v90 = vld [vmem:[%s2 + $0x1e0] sm:$0xff]
  %v91 = vld [vmem:[%s2 + $0x1e8] sm:$0xff]
  %v92 = vld [vmem:[%s2 + $0x1f0] sm:$0xff]
  %v93 = vld [vmem:[%s2 + $0x1f8] sm:$0xff]
  %v94 = vld [vmem:[%s1] sm:$0xff]
  %v95 = vld [vmem:[%s1 + $0x8] sm:$0xff]
  %v96 = vld [vmem:[%s1 + $0x10] sm:$0xff]
  %v97 = vld [vmem:[%s1 + $0x18] sm:$0xff]
  %v98 = vld [vmem:[%s1 + $0x20] sm:$0xff]
  %v99 = vld [vmem:[%s1 + $0x28] sm:$0xff]
  %v100 = vld [vmem:[%s1 + $0x30] sm:$0xff]
  %v101 = vld [vmem:[%s1 + $0x38] sm:$0xff]
  %103 = vset.pattern.permute.xlu0 0
  %104 = vperm.xlu0 %103, %v94
  %v105 = vpop.permute.xlu0 %104
  %108 = vset.pattern.permute.xlu0 0
  %109 = vperm.xlu0 %108, %v95
  %v110 = vpop.permute.xlu0 %109
  %113 = vset.pattern.permute.xlu0 0
  %114 = vperm.xlu0 %113, %v96
  %v115 = vpop.permute.xlu0 %114
  %118 = vset.pattern.permute.xlu0 0
  %119 = vperm.xlu0 %118, %v97
  %v120 = vpop.permute.xlu0 %119
  %123 = vset.pattern.permute.xlu0 0
  %124 = vperm.xlu0 %123, %v98
  %v125 = vpop.permute.xlu0 %124
  %128 = vset.pattern.permute.xlu0 0
  %129 = vperm.xlu0 %128, %v99
  %v130 = vpop.permute.xlu0 %129
  %133 = vset.pattern.permute.xlu0 0
  %134 = vperm.xlu0 %133, %v100
  %v135 = vpop.permute.xlu0 %134
  %138 = vset.pattern.permute.xlu0 0
  %139 = vperm.xlu0 %138, %v101
  %v140 = vpop.permute.xlu0 %139
  %v158 = vunpack.c.l.b16 %v14
  %v159 = vunpack.c.h.b16 %v14
  %v160 = vunpack.c.l.b16 %v15
  %v161 = vunpack.c.h.b16 %v15
  %v162 = vunpack.c.l.b16 %v16
  %v163 = vunpack.c.h.b16 %v16
  %v164 = vunpack.c.l.b16 %v17
  %v165 = vunpack.c.h.b16 %v17
  %v166 = vunpack.c.l.b16 %v18
  %v167 = vunpack.c.h.b16 %v18
  %v168 = vunpack.c.l.b16 %v19
  %v169 = vunpack.c.h.b16 %v19
  %v170 = vunpack.c.l.b16 %v20
  %v171 = vunpack.c.h.b16 %v20
  %v172 = vunpack.c.l.b16 %v21
  %v173 = vunpack.c.h.b16 %v21
  %v174 = vunpack.c.l.b16 %v22
  %v175 = vunpack.c.h.b16 %v22
  %v176 = vunpack.c.l.b16 %v23
  %v177 = vunpack.c.h.b16 %v23
  %v178 = vunpack.c.l.b16 %v24
  %v179 = vunpack.c.h.b16 %v24
  %v180 = vunpack.c.l.b16 %v25
  %v181 = vunpack.c.h.b16 %v25
  %v182 = vunpack.c.l.b16 %v26
  %v183 = vunpack.c.h.b16 %v26
  %v184 = vunpack.c.l.b16 %v27
  %v185 = vunpack.c.h.b16 %v27
  %v186 = vunpack.c.l.b16 %v28
  %v187 = vunpack.c.h.b16 %v28
  %v188 = vunpack.c.l.b16 %v29
  %v189 = vunpack.c.h.b16 %v29
  %v190 = vpack.c.b16 %v162, %v158
  %v191 = vpack.c.b16 %v163, %v159
  %v192 = vpack.c.b16 %v164, %v160
  %v193 = vpack.c.b16 %v165, %v161
  %v194 = vpack.c.b16 %v170, %v166
  %v195 = vpack.c.b16 %v171, %v167
  %v196 = vpack.c.b16 %v172, %v168
  %v197 = vpack.c.b16 %v173, %v169
  %v198 = vpack.c.b16 %v178, %v174
  %v199 = vpack.c.b16 %v179, %v175
  %v200 = vpack.c.b16 %v180, %v176
  %v201 = vpack.c.b16 %v181, %v177
  %v202 = vpack.c.b16 %v186, %v182
  %v203 = vpack.c.b16 %v187, %v183
  %v204 = vpack.c.b16 %v188, %v184
  %v205 = vpack.c.b16 %v189, %v185
  %v286 = vunpack.c.l.b16 %v30
  %v287 = vunpack.c.h.b16 %v30
  %v288 = vunpack.c.l.b16 %v31
  %v289 = vunpack.c.h.b16 %v31
  %v290 = vunpack.c.l.b16 %v32
  %v291 = vunpack.c.h.b16 %v32
  %v292 = vunpack.c.l.b16 %v33
  %v293 = vunpack.c.h.b16 %v33
  %v294 = vunpack.c.l.b16 %v34
  %v295 = vunpack.c.h.b16 %v34
  %v296 = vunpack.c.l.b16 %v35
  %v297 = vunpack.c.h.b16 %v35
  %v298 = vunpack.c.l.b16 %v36
  %v299 = vunpack.c.h.b16 %v36
  %v300 = vunpack.c.l.b16 %v37
  %v301 = vunpack.c.h.b16 %v37
  %v302 = vunpack.c.l.b16 %v38
  %v303 = vunpack.c.h.b16 %v38
  %v304 = vunpack.c.l.b16 %v39
  %v305 = vunpack.c.h.b16 %v39
  %v306 = vunpack.c.l.b16 %v40
  %v307 = vunpack.c.h.b16 %v40
  %v308 = vunpack.c.l.b16 %v41
  %v309 = vunpack.c.h.b16 %v41
  %v310 = vunpack.c.l.b16 %v42
  %v311 = vunpack.c.h.b16 %v42
  %v312 = vunpack.c.l.b16 %v43
  %v313 = vunpack.c.h.b16 %v43
  %v314 = vunpack.c.l.b16 %v44
  %v315 = vunpack.c.h.b16 %v44
  %v316 = vunpack.c.l.b16 %v45
  %v317 = vunpack.c.h.b16 %v45
  %v318 = vunpack.c.l.b16 %v46
  %v319 = vunpack.c.h.b16 %v46
  %v320 = vunpack.c.l.b16 %v47
  %v321 = vunpack.c.h.b16 %v47
  %v322 = vunpack.c.l.b16 %v48
  %v323 = vunpack.c.h.b16 %v48
  %v324 = vunpack.c.l.b16 %v49
  %v325 = vunpack.c.h.b16 %v49
  %v326 = vunpack.c.l.b16 %v50
  %v327 = vunpack.c.h.b16 %v50
  %v328 = vunpack.c.l.b16 %v51
  %v329 = vunpack.c.h.b16 %v51
  %v330 = vunpack.c.l.b16 %v52
  %v331 = vunpack.c.h.b16 %v52
  %v332 = vunpack.c.l.b16 %v53
  %v333 = vunpack.c.h.b16 %v53
  %v334 = vunpack.c.l.b16 %v54
  %v335 = vunpack.c.h.b16 %v54
  %v336 = vunpack.c.l.b16 %v55
  %v337 = vunpack.c.h.b16 %v55
  %v338 = vunpack.c.l.b16 %v56
  %v339 = vunpack.c.h.b16 %v56
  %v340 = vunpack.c.l.b16 %v57
  %v341 = vunpack.c.h.b16 %v57
  %v342 = vunpack.c.l.b16 %v58
  %v343 = vunpack.c.h.b16 %v58
  %v344 = vunpack.c.l.b16 %v59
  %v345 = vunpack.c.h.b16 %v59
  %v346 = vunpack.c.l.b16 %v60
  %v347 = vunpack.c.h.b16 %v60
  %v348 = vunpack.c.l.b16 %v61
  %v349 = vunpack.c.h.b16 %v61
  %v350 = vunpack.c.l.b16 %v62
  %v351 = vunpack.c.h.b16 %v62
  %v352 = vunpack.c.l.b16 %v63
  %v353 = vunpack.c.h.b16 %v63
  %v354 = vunpack.c.l.b16 %v64
  %v355 = vunpack.c.h.b16 %v64
  %v356 = vunpack.c.l.b16 %v65
  %v357 = vunpack.c.h.b16 %v65
  %v358 = vunpack.c.l.b16 %v66
  %v359 = vunpack.c.h.b16 %v66
  %v360 = vunpack.c.l.b16 %v67
  %v361 = vunpack.c.h.b16 %v67
  %v362 = vunpack.c.l.b16 %v68
  %v363 = vunpack.c.h.b16 %v68
  %v364 = vunpack.c.l.b16 %v69
  %v365 = vunpack.c.h.b16 %v69
  %v366 = vunpack.c.l.b16 %v70
  %v367 = vunpack.c.h.b16 %v70
  %v368 = vunpack.c.l.b16 %v71
  %v369 = vunpack.c.h.b16 %v71
  %v370 = vunpack.c.l.b16 %v72
  %v371 = vunpack.c.h.b16 %v72
  %v372 = vunpack.c.l.b16 %v73
  %v373 = vunpack.c.h.b16 %v73
  %v374 = vunpack.c.l.b16 %v74
  %v375 = vunpack.c.h.b16 %v74
  %v376 = vunpack.c.l.b16 %v75
  %v377 = vunpack.c.h.b16 %v75
  %v378 = vunpack.c.l.b16 %v76
  %v379 = vunpack.c.h.b16 %v76
  %v380 = vunpack.c.l.b16 %v77
  %v381 = vunpack.c.h.b16 %v77
  %v382 = vunpack.c.l.b16 %v78
  %v383 = vunpack.c.h.b16 %v78
  %v384 = vunpack.c.l.b16 %v79
  %v385 = vunpack.c.h.b16 %v79
  %v386 = vunpack.c.l.b16 %v80
  %v387 = vunpack.c.h.b16 %v80
  %v388 = vunpack.c.l.b16 %v81
  %v389 = vunpack.c.h.b16 %v81
  %v390 = vunpack.c.l.b16 %v82
  %v391 = vunpack.c.h.b16 %v82
  %v392 = vunpack.c.l.b16 %v83
  %v393 = vunpack.c.h.b16 %v83
  %v394 = vunpack.c.l.b16 %v84
  %v395 = vunpack.c.h.b16 %v84
  %v396 = vunpack.c.l.b16 %v85
  %v397 = vunpack.c.h.b16 %v85
  %v398 = vunpack.c.l.b16 %v86
  %v399 = vunpack.c.h.b16 %v86
  %v400 = vunpack.c.l.b16 %v87
  %v401 = vunpack.c.h.b16 %v87
  %v402 = vunpack.c.l.b16 %v88
  %v403 = vunpack.c.h.b16 %v88
  %v404 = vunpack.c.l.b16 %v89
  %v405 = vunpack.c.h.b16 %v89
  %v406 = vunpack.c.l.b16 %v90
  %v407 = vunpack.c.h.b16 %v90
  %v408 = vunpack.c.l.b16 %v91
  %v409 = vunpack.c.h.b16 %v91
  %v410 = vunpack.c.l.b16 %v92
  %v411 = vunpack.c.h.b16 %v92
  %v412 = vunpack.c.l.b16 %v93
  %v413 = vunpack.c.h.b16 %v93
  %v414 = vpack.c.b16 %v288, %v286
  %v415 = vpack.c.b16 %v289, %v287
  %v416 = vpack.c.b16 %v292, %v290
  %v417 = vpack.c.b16 %v293, %v291
  %v418 = vpack.c.b16 %v296, %v294
  %v419 = vpack.c.b16 %v297, %v295
  %v420 = vpack.c.b16 %v300, %v298
  %v421 = vpack.c.b16 %v301, %v299
  %v422 = vpack.c.b16 %v304, %v302
  %v423 = vpack.c.b16 %v305, %v303
  %v424 = vpack.c.b16 %v308, %v306
  %v425 = vpack.c.b16 %v309, %v307
  %v426 = vpack.c.b16 %v312, %v310
  %v427 = vpack.c.b16 %v313, %v311
  %v428 = vpack.c.b16 %v316, %v314
  %v429 = vpack.c.b16 %v317, %v315
  %v430 = vpack.c.b16 %v320, %v318
  %v431 = vpack.c.b16 %v321, %v319
  %v432 = vpack.c.b16 %v324, %v322
  %v433 = vpack.c.b16 %v325, %v323
  %v434 = vpack.c.b16 %v328, %v326
  %v435 = vpack.c.b16 %v329, %v327
  %v436 = vpack.c.b16 %v332, %v330
  %v437 = vpack.c.b16 %v333, %v331
  %v438 = vpack.c.b16 %v336, %v334
  %v439 = vpack.c.b16 %v337, %v335
  %v440 = vpack.c.b16 %v340, %v338
  %v441 = vpack.c.b16 %v341, %v339
  %v442 = vpack.c.b16 %v344, %v342
  %v443 = vpack.c.b16 %v345, %v343
  %v444 = vpack.c.b16 %v348, %v346
  %v445 = vpack.c.b16 %v349, %v347
  %v446 = vpack.c.b16 %v352, %v350
  %v447 = vpack.c.b16 %v353, %v351
  %v448 = vpack.c.b16 %v356, %v354
  %v449 = vpack.c.b16 %v357, %v355
  %v450 = vpack.c.b16 %v360, %v358
  %v451 = vpack.c.b16 %v361, %v359
  %v452 = vpack.c.b16 %v364, %v362
  %v453 = vpack.c.b16 %v365, %v363
  %v454 = vpack.c.b16 %v368, %v366
  %v455 = vpack.c.b16 %v369, %v367
  %v456 = vpack.c.b16 %v372, %v370
  %v457 = vpack.c.b16 %v373, %v371
  %v458 = vpack.c.b16 %v376, %v374
  %v459 = vpack.c.b16 %v377, %v375
  %v460 = vpack.c.b16 %v380, %v378
  %v461 = vpack.c.b16 %v381, %v379
  %v462 = vpack.c.b16 %v384, %v382
  %v463 = vpack.c.b16 %v385, %v383
  %v464 = vpack.c.b16 %v388, %v386
  %v465 = vpack.c.b16 %v389, %v387
  %v466 = vpack.c.b16 %v392, %v390
  %v467 = vpack.c.b16 %v393, %v391
  %v468 = vpack.c.b16 %v396, %v394
  %v469 = vpack.c.b16 %v397, %v395
  %v470 = vpack.c.b16 %v400, %v398
  %v471 = vpack.c.b16 %v401, %v399
  %v472 = vpack.c.b16 %v404, %v402
  %v473 = vpack.c.b16 %v405, %v403
  %v474 = vpack.c.b16 %v408, %v406
  %v475 = vpack.c.b16 %v409, %v407
  %v476 = vpack.c.b16 %v412, %v410
  %v477 = vpack.c.b16 %v413, %v411
  %542 = vmatpush.bf16.msra.mxu0 %v428
  %543 = vmatpush.bf16.msra.mxu0 %v426
  %544 = vmatpush.bf16.msra.mxu0 %v424
  %545 = vmatpush.bf16.msra.mxu0 %v422
  %546 = vmatpush.bf16.msra.mxu0 %v420
  %547 = vmatpush.bf16.msra.mxu0 %v418
  %548 = vmatpush.bf16.msra.mxu0 %v416
  %549 = vmatpush.bf16.msra.mxu0 %v414
  %550 = vmatmul.bf16.gmra.mxu0 %v190
  %v551 = vpop.f32.mrf.mxu0
  %v552 = vadd.f32 %v105, %v551
  %v553 = vpop.f32.mrf.mxu0
  %v554 = vadd.f32 %v110, %v553
  %555 = vmatmul.bf16.gmra.mxu0 %v194
  %v556 = vpop.f32.mrf.mxu0
  %v557 = vadd.f32 %v115, %v556
  %v558 = vpop.f32.mrf.mxu0
  %v559 = vadd.f32 %v120, %v558
  %560 = vmatmul.bf16.gmra.mxu0 %v198
  %v561 = vpop.f32.mrf.mxu0
  %v562 = vadd.f32 %v125, %v561
  %v563 = vpop.f32.mrf.mxu0
  %v564 = vadd.f32 %v130, %v563
  %565 = vmatmul.bf16.gmra.mxu0 %v202
  %v566 = vpop.f32.mrf.mxu0
  %v567 = vadd.f32 %v135, %v566
  %v568 = vpop.f32.mrf.mxu0
  %v569 = vadd.f32 %v140, %v568
  %570 = vdwg.mxu0
  %571 = vmatpush.bf16.msra.mxu0 %v444
  %572 = vmatpush.bf16.msra.mxu0 %v442
  %573 = vmatpush.bf16.msra.mxu0 %v440
  %574 = vmatpush.bf16.msra.mxu0 %v438
  %575 = vmatpush.bf16.msra.mxu0 %v436
  %576 = vmatpush.bf16.msra.mxu0 %v434
  %577 = vmatpush.bf16.msra.mxu0 %v432
  %578 = vmatpush.bf16.msra.mxu0 %v430
  %579 = vmatmul.bf16.gmra.mxu0 %v191
  %v580 = vpop.f32.mrf.mxu0
  %v581 = vadd.f32 %v552, %v580
  %v582 = vpop.f32.mrf.mxu0
  %v583 = vadd.f32 %v554, %v582
  %584 = vmatmul.bf16.gmra.mxu0 %v195
  %v585 = vpop.f32.mrf.mxu0
  %v586 = vadd.f32 %v557, %v585
  %v587 = vpop.f32.mrf.mxu0
  %v588 = vadd.f32 %v559, %v587
  %589 = vmatmul.bf16.gmra.mxu0 %v199
  %v590 = vpop.f32.mrf.mxu0
  %v591 = vadd.f32 %v562, %v590
  %v592 = vpop.f32.mrf.mxu0
  %v593 = vadd.f32 %v564, %v592
  %594 = vmatmul.bf16.gmra.mxu0 %v203
  %v595 = vpop.f32.mrf.mxu0
  %v596 = vadd.f32 %v567, %v595
  %v597 = vpop.f32.mrf.mxu0
  %v598 = vadd.f32 %v569, %v597
  %599 = vdwg.mxu0
  %600 = vmatpush.bf16.msra.mxu0 %v460
  %601 = vmatpush.bf16.msra.mxu0 %v458
  %602 = vmatpush.bf16.msra.mxu0 %v456
  %603 = vmatpush.bf16.msra.mxu0 %v454
  %604 = vmatpush.bf16.msra.mxu0 %v452
  %605 = vmatpush.bf16.msra.mxu0 %v450
  %606 = vmatpush.bf16.msra.mxu0 %v448
  %607 = vmatpush.bf16.msra.mxu0 %v446
  %608 = vmatmul.bf16.gmra.mxu0 %v192
  %v609 = vpop.f32.mrf.mxu0
  %v610 = vadd.f32 %v581, %v609
  %v611 = vpop.f32.mrf.mxu0
  %v612 = vadd.f32 %v583, %v611
  %613 = vmatmul.bf16.gmra.mxu0 %v196
  %v614 = vpop.f32.mrf.mxu0
  %v615 = vadd.f32 %v586, %v614
  %v616 = vpop.f32.mrf.mxu0
  %v617 = vadd.f32 %v588, %v616
  %618 = vmatmul.bf16.gmra.mxu0 %v200
  %v619 = vpop.f32.mrf.mxu0
  %v620 = vadd.f32 %v591, %v619
  %v621 = vpop.f32.mrf.mxu0
  %v622 = vadd.f32 %v593, %v621
  %623 = vmatmul.bf16.gmra.mxu0 %v204
  %v624 = vpop.f32.mrf.mxu0
  %v625 = vadd.f32 %v596, %v624
  %v626 = vpop.f32.mrf.mxu0
  %v627 = vadd.f32 %v598, %v626
  %628 = vdwg.mxu0
  %629 = vmatpush.bf16.msra.mxu0 %v476
  %630 = vmatpush.bf16.msra.mxu0 %v474
  %631 = vmatpush.bf16.msra.mxu0 %v472
  %632 = vmatpush.bf16.msra.mxu0 %v470
  %633 = vmatpush.bf16.msra.mxu0 %v468
  %634 = vmatpush.bf16.msra.mxu0 %v466
  %635 = vmatpush.bf16.msra.mxu0 %v464
  %636 = vmatpush.bf16.msra.mxu0 %v462
  %637 = vmatmul.bf16.gmra.mxu0 %v193
  %v638 = vpop.f32.mrf.mxu0
  %v639 = vadd.f32 %v610, %v638
  %v640 = vpop.f32.mrf.mxu0
  %v641 = vadd.f32 %v612, %v640
  %642 = vmatmul.bf16.gmra.mxu0 %v197
  %v643 = vpop.f32.mrf.mxu0
  %v644 = vadd.f32 %v615, %v643
  %v645 = vpop.f32.mrf.mxu0
  %v646 = vadd.f32 %v617, %v645
  %647 = vmatmul.bf16.gmra.mxu0 %v201
  %v648 = vpop.f32.mrf.mxu0
  %v649 = vadd.f32 %v620, %v648
  %v650 = vpop.f32.mrf.mxu0
  %v651 = vadd.f32 %v622, %v650
  %652 = vmatmul.bf16.gmra.mxu0 %v205
  %v653 = vpop.f32.mrf.mxu0
  %v654 = vadd.f32 %v625, %v653
  %v655 = vpop.f32.mrf.mxu0
  %v656 = vadd.f32 %v627, %v655
  %657 = vdwg.mxu0
  %658 = vmatpush.bf16.msra.mxu0 %v429
  %659 = vmatpush.bf16.msra.mxu0 %v427
  %660 = vmatpush.bf16.msra.mxu0 %v425
  %661 = vmatpush.bf16.msra.mxu0 %v423
  %662 = vmatpush.bf16.msra.mxu0 %v421
  %663 = vmatpush.bf16.msra.mxu0 %v419
  %664 = vmatpush.bf16.msra.mxu0 %v417
  %665 = vmatpush.bf16.msra.mxu0 %v415
  %666 = vmatmul.bf16.gmra.mxu0 %v190
  %v667 = vpop.f32.mrf.mxu0
  %v668 = vadd.f32 %v105, %v667
  %v669 = vpop.f32.mrf.mxu0
  %v670 = vadd.f32 %v110, %v669
  %671 = vmatmul.bf16.gmra.mxu0 %v194
  %v672 = vpop.f32.mrf.mxu0
  %v673 = vadd.f32 %v115, %v672
  %v674 = vpop.f32.mrf.mxu0
  %v675 = vadd.f32 %v120, %v674
  %676 = vmatmul.bf16.gmra.mxu0 %v198
  %v677 = vpop.f32.mrf.mxu0
  %v678 = vadd.f32 %v125, %v677
  %v679 = vpop.f32.mrf.mxu0
  %v680 = vadd.f32 %v130, %v679
  %681 = vmatmul.bf16.gmra.mxu0 %v202
  %v682 = vpop.f32.mrf.mxu0
  %v683 = vadd.f32 %v135, %v682
  %v684 = vpop.f32.mrf.mxu0
  %v685 = vadd.f32 %v140, %v684
  %686 = vdwg.mxu0
  %687 = vmatpush.bf16.msra.mxu0 %v445
  %688 = vmatpush.bf16.msra.mxu0 %v443
  %689 = vmatpush.bf16.msra.mxu0 %v441
  %690 = vmatpush.bf16.msra.mxu0 %v439
  %691 = vmatpush.bf16.msra.mxu0 %v437
  %692 = vmatpush.bf16.msra.mxu0 %v435
  %693 = vmatpush.bf16.msra.mxu0 %v433
  %694 = vmatpush.bf16.msra.mxu0 %v431
  %695 = vmatmul.bf16.gmra.mxu0 %v191
  %v696 = vpop.f32.mrf.mxu0
  %v697 = vadd.f32 %v668, %v696
  %v698 = vpop.f32.mrf.mxu0
  %v699 = vadd.f32 %v670, %v698
  %700 = vmatmul.bf16.gmra.mxu0 %v195
  %v701 = vpop.f32.mrf.mxu0
  %v702 = vadd.f32 %v673, %v701
  %v703 = vpop.f32.mrf.mxu0
  %v704 = vadd.f32 %v675, %v703
  %705 = vmatmul.bf16.gmra.mxu0 %v199
  %v706 = vpop.f32.mrf.mxu0
  %v707 = vadd.f32 %v678, %v706
  %v708 = vpop.f32.mrf.mxu0
  %v709 = vadd.f32 %v680, %v708
  %710 = vmatmul.bf16.gmra.mxu0 %v203
  %v711 = vpop.f32.mrf.mxu0
  %v712 = vadd.f32 %v683, %v711
  %v713 = vpop.f32.mrf.mxu0
  %v714 = vadd.f32 %v685, %v713
  %715 = vdwg.mxu0
  %716 = vmatpush.bf16.msra.mxu0 %v461
  %717 = vmatpush.bf16.msra.mxu0 %v459
  %718 = vmatpush.bf16.msra.mxu0 %v457
  %719 = vmatpush.bf16.msra.mxu0 %v455
  %720 = vmatpush.bf16.msra.mxu0 %v453
  %721 = vmatpush.bf16.msra.mxu0 %v451
  %722 = vmatpush.bf16.msra.mxu0 %v449
  %723 = vmatpush.bf16.msra.mxu0 %v447
  %724 = vmatmul.bf16.gmra.mxu0 %v192
  %v725 = vpop.f32.mrf.mxu0
  %v726 = vadd.f32 %v697, %v725
  %v727 = vpop.f32.mrf.mxu0
  %v728 = vadd.f32 %v699, %v727
  %729 = vmatmul.bf16.gmra.mxu0 %v196
  %v730 = vpop.f32.mrf.mxu0
  %v731 = vadd.f32 %v702, %v730
  %v732 = vpop.f32.mrf.mxu0
  %v733 = vadd.f32 %v704, %v732
  %734 = vmatmul.bf16.gmra.mxu0 %v200
  %v735 = vpop.f32.mrf.mxu0
  %v736 = vadd.f32 %v707, %v735
  %v737 = vpop.f32.mrf.mxu0
  %v738 = vadd.f32 %v709, %v737
  %739 = vmatmul.bf16.gmra.mxu0 %v204
  %v740 = vpop.f32.mrf.mxu0
  %v741 = vadd.f32 %v712, %v740
  %v742 = vpop.f32.mrf.mxu0
  %v743 = vadd.f32 %v714, %v742
  %744 = vdwg.mxu0
  %745 = vmatpush.bf16.msra.mxu0 %v477
  %746 = vmatpush.bf16.msra.mxu0 %v475
  %747 = vmatpush.bf16.msra.mxu0 %v473
  %748 = vmatpush.bf16.msra.mxu0 %v471
  %749 = vmatpush.bf16.msra.mxu0 %v469
  %750 = vmatpush.bf16.msra.mxu0 %v467
  %751 = vmatpush.bf16.msra.mxu0 %v465
  %752 = vmatpush.bf16.msra.mxu0 %v463
  %753 = vmatmul.bf16.gmra.mxu0 %v193
  %v754 = vpop.f32.mrf.mxu0
  %v755 = vadd.f32 %v726, %v754
  %v756 = vpop.f32.mrf.mxu0
  %v757 = vadd.f32 %v728, %v756
  %758 = vmatmul.bf16.gmra.mxu0 %v197
  %v759 = vpop.f32.mrf.mxu0
  %v760 = vadd.f32 %v731, %v759
  %v761 = vpop.f32.mrf.mxu0
  %v762 = vadd.f32 %v733, %v761
  %763 = vmatmul.bf16.gmra.mxu0 %v201
  %v764 = vpop.f32.mrf.mxu0
  %v765 = vadd.f32 %v736, %v764
  %v766 = vpop.f32.mrf.mxu0
  %v767 = vadd.f32 %v738, %v766
  %768 = vmatmul.bf16.gmra.mxu0 %v205
  %v769 = vpop.f32.mrf.mxu0
  %v770 = vadd.f32 %v741, %v769
  %v771 = vpop.f32.mrf.mxu0
  %v772 = vadd.f32 %v743, %v771
  %773 = vdwg.mxu0
  %v774 = vmax.f32 %v639, 0.0
  %v775 = vmax.f32 %v755, 0.0
  %v776 = vmax.f32 %v641, 0.0
  %v777 = vmax.f32 %v757, 0.0
  %v778 = vmax.f32 %v644, 0.0
  %v779 = vmax.f32 %v760, 0.0
  %v780 = vmax.f32 %v646, 0.0
  %v781 = vmax.f32 %v762, 0.0
  %v782 = vmax.f32 %v649, 0.0
  %v783 = vmax.f32 %v765, 0.0
  %v784 = vmax.f32 %v651, 0.0
  %v785 = vmax.f32 %v767, 0.0
  %v786 = vmax.f32 %v654, 0.0
  %v787 = vmax.f32 %v770, 0.0
  %v788 = vmax.f32 %v656, 0.0
  %v789 = vmax.f32 %v772, 0.0
  %v790 = vpack.c.bf16 %v775, %v774
  %v791 = vpack.c.bf16 %v777, %v776
  %v792 = vpack.c.bf16 %v779, %v778
  %v793 = vpack.c.bf16 %v781, %v780
  %v794 = vpack.c.bf16 %v783, %v782
  %v795 = vpack.c.bf16 %v785, %v784
  %v796 = vpack.c.bf16 %v787, %v786
  %v797 = vpack.c.bf16 %v789, %v788
  %798 = vst [vmem:[%s3] sm:$0xff] %v790
  %799 = vst [vmem:[%s3 + $0x8] sm:$0xff] %v791
  %800 = vst [vmem:[%s3 + $0x10] sm:$0xff] %v792
  %801 = vst [vmem:[%s3 + $0x18] sm:$0xff] %v793
  %802 = vst [vmem:[%s3 + $0x20] sm:$0xff] %v794
  %803 = vst [vmem:[%s3 + $0x28] sm:$0xff] %v795
  %804 = vst [vmem:[%s3 + $0x30] sm:$0xff] %v796
  %805 = vst [vmem:[%s3 + $0x38] sm:$0xff] %v797
  // Predicated region
  $region14: #{deepmind_forward.4} parent=0 // pred_check
    _
  $region15: #{deepmind_forward.4} parent=0 // pred_check_branch
    %807 = sbr.rel (0) target = $region17
  $region16: #{deepmind_forward.4} parent=0 // pred_region
    _
  $region17: #{deepmind_forward.4} parent=0 // pred_fallthru
    _
  // Predicated region
  $region18: #{deepmind_forward.4} parent=0 // pred_check
    _
  $region19: #{deepmind_forward.4} parent=0 // pred_check_branch
    %809 = sbr.rel (0) target = $region21
  $region20: #{deepmind_forward.4} parent=0 // pred_region
    _
  $region21: #{deepmind_forward.4} parent=0 // pred_fallthru
    _

// kernel: deepmind_forward.5
$region0: #{deepmind_forward.5}
  #allocation0 [shape = 'u32[]', space=smem, size = 0x4, offset = 0x4, fixed_abs, tag = 'smem constant byte address 0x4 - core index']
  #allocation1 [shape = 'u32[72,128]{1,0:T(1,128)}', space=vmem, size = 0x9000, scoped, tag = 'internal scratch']
  %s0 = inlined_call_operand.vmem [shape: bf16[32,640], index: 0, kind: input, shape index: {}]
  %s1 = inlined_call_operand.vmem [shape: f32[32,1], index: 1, kind: input, shape index: {}]
  %s2 = inlined_call_operand.vmem [shape: bf16[640,128], index: 2, kind: input, shape index: {}]
  %s3 = inlined_call_operand.vmem [shape: f32[32,128], index: 3, kind: output, shape index: {}]
  %s4 = sld [smem:[#allocation0]]
  $region22: #{deepmind_forward.5} parent=0
    _
  %s6 = ssub.s32 1, %s4
  %s7 = scalar_select 0, %s6, %s4
  // Predicated region
  $region2: #{deepmind_forward.5} parent=0 // pred_check
    _
  $region3: #{deepmind_forward.5} parent=0 // pred_check_branch
    %9 = sbr.rel (0) target = $region5
  $region4: #{deepmind_forward.5} parent=0 // pred_region
    _
  $region5: #{deepmind_forward.5} parent=0 // pred_fallthru
    _
  // Predicated region
  $region6: #{deepmind_forward.5} parent=0 // pred_check
    _
  $region7: #{deepmind_forward.5} parent=0 // pred_check_branch
    %11 = sbr.rel (0) target = $region9
  $region8: #{deepmind_forward.5} parent=0 // pred_region
    _
  $region9: #{deepmind_forward.5} parent=0 // pred_fallthru
    _
  // Predicated region
  $region10: #{deepmind_forward.5} parent=0 // pred_check
    _
  $region11: #{deepmind_forward.5} parent=0 // pred_check_branch
    %13 = sbr.rel (0) target = $region13
  $region12: #{deepmind_forward.5} parent=0 // pred_region
    _
  $region13: #{deepmind_forward.5} parent=0 // pred_fallthru
    _
  %v14 = vld [vmem:[%s0] sm:$0xff]
  %v15 = vld [vmem:[%s0 + $0x8] sm:$0xff]
  %v16 = vld [vmem:[%s0 + $0x10] sm:$0xf]
  %v17 = vld [vmem:[%s0 + $0x14] sm:$0xff]
  %v18 = vld [vmem:[%s0 + $0x1c] sm:$0xff]
  %v19 = vld [vmem:[%s0 + $0x24] sm:$0xf]
  %v20 = vld [vmem:[%s0 + $0x28] sm:$0xff]
  %v21 = vld [vmem:[%s0 + $0x30] sm:$0xff]
  %v22 = vld [vmem:[%s0 + $0x38] sm:$0xf]
  %v23 = vld [vmem:[%s0 + $0x3c] sm:$0xff]
  %v24 = vld [vmem:[%s0 + $0x44] sm:$0xff]
  %v25 = vld [vmem:[%s0 + $0x4c] sm:$0xf]
  %v26 = vld [vmem:[%s2] sm:$0xf]
  %v27 = vld [vmem:[%s2 + $0x4] sm:$0xf]
  %v28 = vld [vmem:[%s2 + $0x8] sm:$0xf]
  %v29 = vld [vmem:[%s2 + $0xc] sm:$0xf]
  %v30 = vld [vmem:[%s2 + $0x10] sm:$0xf]
  %v31 = vld [vmem:[%s2 + $0x14] sm:$0xf]
  %v32 = vld [vmem:[%s2 + $0x18] sm:$0xf]
  %v33 = vld [vmem:[%s2 + $0x1c] sm:$0xf]
  %v34 = vld [vmem:[%s2 + $0x20] sm:$0xf]
  %v35 = vld [vmem:[%s2 + $0x24] sm:$0xf]
  %v36 = vld [vmem:[%s2 + $0x28] sm:$0xf]
  %v37 = vld [vmem:[%s2 + $0x2c] sm:$0xf]
  %v38 = vld [vmem:[%s2 + $0x30] sm:$0xf]
  %v39 = vld [vmem:[%s2 + $0x34] sm:$0xf]
  %v40 = vld [vmem:[%s2 + $0x38] sm:$0xf]
  %v41 = vld [vmem:[%s2 + $0x3c] sm:$0xf]
  %v42 = vld [vmem:[%s2 + $0x40] sm:$0xf]
  %v43 = vld [vmem:[%s2 + $0x44] sm:$0xf]
  %v44 = vld [vmem:[%s2 + $0x48] sm:$0xf]
  %v45 = vld [vmem:[%s2 + $0x4c] sm:$0xf]
  %v46 = vld [vmem:[%s2 + $0x50] sm:$0xf]
  %v47 = vld [vmem:[%s2 + $0x54] sm:$0xf]
  %v48 = vld [vmem:[%s2 + $0x58] sm:$0xf]
  %v49 = vld [vmem:[%s2 + $0x5c] sm:$0xf]
  %v50 = vld [vmem:[%s2 + $0x60] sm:$0xf]
  %v51 = vld [vmem:[%s2 + $0x64] sm:$0xf]
  %v52 = vld [vmem:[%s2 + $0x68] sm:$0xf]
  %v53 = vld [vmem:[%s2 + $0x6c] sm:$0xf]
  %v54 = vld [vmem:[%s2 + $0x70] sm:$0xf]
  %v55 = vld [vmem:[%s2 + $0x74] sm:$0xf]
  %v56 = vld [vmem:[%s2 + $0x78] sm:$0xf]
  %v57 = vld [vmem:[%s2 + $0x7c] sm:$0xf]
  %v58 = vld [vmem:[%s2 + $0x80] sm:$0xf]
  %v59 = vld [vmem:[%s2 + $0x84] sm:$0xf]
  %v60 = vld [vmem:[%s2 + $0x88] sm:$0xf]
  %v61 = vld [vmem:[%s2 + $0x8c] sm:$0xf]
  %v62 = vld [vmem:[%s2 + $0x90] sm:$0xf]
  %v63 = vld [vmem:[%s2 + $0x94] sm:$0xf]
  %v64 = vld [vmem:[%s2 + $0x98] sm:$0xf]
  %v65 = vld [vmem:[%s2 + $0x9c] sm:$0xf]
  %v66 = vld [vmem:[%s2 + $0xa0] sm:$0xf]
  %v67 = vld [vmem:[%s2 + $0xa4] sm:$0xf]
  %v68 = vld [vmem:[%s2 + $0xa8] sm:$0xf]
  %v69 = vld [vmem:[%s2 + $0xac] sm:$0xf]
  %v70 = vld [vmem:[%s2 + $0xb0] sm:$0xf]
  %v71 = vld [vmem:[%s2 + $0xb4] sm:$0xf]
  %v72 = vld [vmem:[%s2 + $0xb8] sm:$0xf]
  %v73 = vld [vmem:[%s2 + $0xbc] sm:$0xf]
  %v74 = vld [vmem:[%s2 + $0xc0] sm:$0xf]
  %v75 = vld [vmem:[%s2 + $0xc4] sm:$0xf]
  %v76 = vld [vmem:[%s2 + $0xc8] sm:$0xf]
  %v77 = vld [vmem:[%s2 + $0xcc] sm:$0xf]
  %v78 = vld [vmem:[%s2 + $0xd0] sm:$0xf]
  %v79 = vld [vmem:[%s2 + $0xd4] sm:$0xf]
  %v80 = vld [vmem:[%s2 + $0xd8] sm:$0xf]
  %v81 = vld [vmem:[%s2 + $0xdc] sm:$0xf]
  %v82 = vld [vmem:[%s2 + $0xe0] sm:$0xf]
  %v83 = vld [vmem:[%s2 + $0xe4] sm:$0xf]
  %v84 = vld [vmem:[%s2 + $0xe8] sm:$0xf]
  %v85 = vld [vmem:[%s2 + $0xec] sm:$0xf]
  %v86 = vld [vmem:[%s2 + $0xf0] sm:$0xf]
  %v87 = vld [vmem:[%s2 + $0xf4] sm:$0xf]
  %v88 = vld [vmem:[%s2 + $0xf8] sm:$0xf]
  %v89 = vld [vmem:[%s2 + $0xfc] sm:$0xf]
  %v90 = vld [vmem:[%s2 + $0x100] sm:$0xf]
  %v91 = vld [vmem:[%s2 + $0x104] sm:$0xf]
  %v92 = vld [vmem:[%s2 + $0x108] sm:$0xf]
  %v93 = vld [vmem:[%s2 + $0x10c] sm:$0xf]
  %v94 = vld [vmem:[%s2 + $0x110] sm:$0xf]
  %v95 = vld [vmem:[%s2 + $0x114] sm:$0xf]
  %v96 = vld [vmem:[%s2 + $0x118] sm:$0xf]
  %v97 = vld [vmem:[%s2 + $0x11c] sm:$0xf]
  %v98 = vld [vmem:[%s2 + $0x120] sm:$0xf]
  %v99 = vld [vmem:[%s2 + $0x124] sm:$0xf]
  %v100 = vld [vmem:[%s2 + $0x128] sm:$0xf]
  %v101 = vld [vmem:[%s2 + $0x12c] sm:$0xf]
  %v102 = vld [vmem:[%s2 + $0x130] sm:$0xf]
  %v103 = vld [vmem:[%s2 + $0x134] sm:$0xf]
  %v104 = vld [vmem:[%s2 + $0x138] sm:$0xf]
  %v105 = vld [vmem:[%s2 + $0x13c] sm:$0xf]
  %v106 = vld [vmem:[%s1] sm:$0xff]
  %v107 = vld [vmem:[%s1 + $0x8] sm:$0xff]
  %v108 = vld [vmem:[%s1 + $0x10] sm:$0xff]
  %v109 = vld [vmem:[%s1 + $0x18] sm:$0xff]
  %111 = vset.pattern.permute.xlu0 0
  %112 = vperm.xlu0 %111, %v106
  %v113 = vpop.permute.xlu0 %112
  %116 = vset.pattern.permute.xlu0 0
  %117 = vperm.xlu0 %116, %v107
  %v118 = vpop.permute.xlu0 %117
  %121 = vset.pattern.permute.xlu0 0
  %122 = vperm.xlu0 %121, %v108
  %v123 = vpop.permute.xlu0 %122
  %126 = vset.pattern.permute.xlu0 0
  %127 = vperm.xlu0 %126, %v109
  %v128 = vpop.permute.xlu0 %127
  %v142 = vunpack.c.l.b16 %v14
  %v143 = vunpack.c.h.b16 %v14
  %v144 = vunpack.c.l.b16 %v15
  %v145 = vunpack.c.h.b16 %v15
  %v146 = vunpack.c.l.b16 %v16
  %v147 = vunpack.c.l.b16 %v17
  %v148 = vunpack.c.h.b16 %v17
  %v149 = vunpack.c.l.b16 %v18
  %v150 = vunpack.c.h.b16 %v18
  %v151 = vunpack.c.l.b16 %v19
  %v152 = vunpack.c.l.b16 %v20
  %v153 = vunpack.c.h.b16 %v20
  %v154 = vunpack.c.l.b16 %v21
  %v155 = vunpack.c.h.b16 %v21
  %v156 = vunpack.c.l.b16 %v22
  %v157 = vunpack.c.l.b16 %v23
  %v158 = vunpack.c.h.b16 %v23
  %v159 = vunpack.c.l.b16 %v24
  %v160 = vunpack.c.h.b16 %v24
  %v161 = vunpack.c.l.b16 %v25
  %v162 = vpack.c.b16 %v147, %v142
  %v163 = vpack.c.b16 %v148, %v143
  %v164 = vpack.c.b16 %v149, %v144
  %v165 = vpack.c.b16 %v150, %v145
  %v166 = vpack.c.b16 %v151, %v146
  %v167 = vpack.c.b16 %v157, %v152
  %v168 = vpack.c.b16 %v158, %v153
  %v169 = vpack.c.b16 %v159, %v154
  %v170 = vpack.c.b16 %v160, %v155
  %v171 = vpack.c.b16 %v161, %v156
  %v262 = vunpack.c.l.b16 %v26
  %v263 = vunpack.c.l.b16 %v27
  %v264 = vunpack.c.l.b16 %v28
  %v265 = vunpack.c.l.b16 %v29
  %v266 = vunpack.c.l.b16 %v30
  %v267 = vunpack.c.l.b16 %v31
  %v268 = vunpack.c.l.b16 %v32
  %v269 = vunpack.c.l.b16 %v33
  %v270 = vunpack.c.l.b16 %v34
  %v271 = vunpack.c.l.b16 %v35
  %v272 = vunpack.c.l.b16 %v36
  %v273 = vunpack.c.l.b16 %v37
  %v274 = vunpack.c.l.b16 %v38
  %v275 = vunpack.c.l.b16 %v39
  %v276 = vunpack.c.l.b16 %v40
  %v277 = vunpack.c.l.b16 %v41
  %v278 = vunpack.c.l.b16 %v42
  %v279 = vunpack.c.l.b16 %v43
  %v280 = vunpack.c.l.b16 %v44
  %v281 = vunpack.c.l.b16 %v45
  %v282 = vunpack.c.l.b16 %v46
  %v283 = vunpack.c.l.b16 %v47
  %v284 = vunpack.c.l.b16 %v48
  %v285 = vunpack.c.l.b16 %v49
  %v286 = vunpack.c.l.b16 %v50
  %v287 = vunpack.c.l.b16 %v51
  %v288 = vunpack.c.l.b16 %v52
  %v289 = vunpack.c.l.b16 %v53
  %v290 = vunpack.c.l.b16 %v54
  %v291 = vunpack.c.l.b16 %v55
  %v292 = vunpack.c.l.b16 %v56
  %v293 = vunpack.c.l.b16 %v57
  %v294 = vunpack.c.l.b16 %v58
  %v295 = vunpack.c.l.b16 %v59
  %v296 = vunpack.c.l.b16 %v60
  %v297 = vunpack.c.l.b16 %v61
  %v298 = vunpack.c.l.b16 %v62
  %v299 = vunpack.c.l.b16 %v63
  %v300 = vunpack.c.l.b16 %v64
  %v301 = vunpack.c.l.b16 %v65
  %v302 = vunpack.c.l.b16 %v66
  %v303 = vunpack.c.l.b16 %v67
  %v304 = vunpack.c.l.b16 %v68
  %v305 = vunpack.c.l.b16 %v69
  %v306 = vunpack.c.l.b16 %v70
  %v307 = vunpack.c.l.b16 %v71
  %v308 = vunpack.c.l.b16 %v72
  %v309 = vunpack.c.l.b16 %v73
  %v310 = vunpack.c.l.b16 %v74
  %v311 = vunpack.c.l.b16 %v75
  %v312 = vunpack.c.l.b16 %v76
  %v313 = vunpack.c.l.b16 %v77
  %v314 = vunpack.c.l.b16 %v78
  %v315 = vunpack.c.l.b16 %v79
  %v316 = vunpack.c.l.b16 %v80
  %v317 = vunpack.c.l.b16 %v81
  %v318 = vunpack.c.l.b16 %v82
  %v319 = vunpack.c.l.b16 %v83
  %v320 = vunpack.c.l.b16 %v84
  %v321 = vunpack.c.l.b16 %v85
  %v322 = vunpack.c.l.b16 %v86
  %v323 = vunpack.c.l.b16 %v87
  %v324 = vunpack.c.l.b16 %v88
  %v325 = vunpack.c.l.b16 %v89
  %v326 = vunpack.c.l.b16 %v90
  %v327 = vunpack.c.l.b16 %v91
  %v328 = vunpack.c.l.b16 %v92
  %v329 = vunpack.c.l.b16 %v93
  %v330 = vunpack.c.l.b16 %v94
  %v331 = vunpack.c.l.b16 %v95
  %v332 = vunpack.c.l.b16 %v96
  %v333 = vunpack.c.l.b16 %v97
  %v334 = vunpack.c.l.b16 %v98
  %v335 = vunpack.c.l.b16 %v99
  %v336 = vunpack.c.l.b16 %v100
  %v337 = vunpack.c.l.b16 %v101
  %v338 = vunpack.c.l.b16 %v102
  %v339 = vunpack.c.l.b16 %v103
  %v340 = vunpack.c.l.b16 %v104
  %v341 = vunpack.c.l.b16 %v105
  %v342 = vpack.c.b16 %v263, %v262
  %v343 = vpack.c.b16 %v265, %v264
  %v344 = vpack.c.b16 %v267, %v266
  %v345 = vpack.c.b16 %v269, %v268
  %v346 = vpack.c.b16 %v271, %v270
  %v347 = vpack.c.b16 %v273, %v272
  %v348 = vpack.c.b16 %v275, %v274
  %v349 = vpack.c.b16 %v277, %v276
  %v350 = vpack.c.b16 %v279, %v278
  %v351 = vpack.c.b16 %v281, %v280
  %v352 = vpack.c.b16 %v283, %v282
  %v353 = vpack.c.b16 %v285, %v284
  %v354 = vpack.c.b16 %v287, %v286
  %v355 = vpack.c.b16 %v289, %v288
  %v356 = vpack.c.b16 %v291, %v290
  %v357 = vpack.c.b16 %v293, %v292
  %v358 = vpack.c.b16 %v295, %v294
  %v359 = vpack.c.b16 %v297, %v296
  %v360 = vpack.c.b16 %v299, %v298
  %v361 = vpack.c.b16 %v301, %v300
  %v362 = vpack.c.b16 %v303, %v302
  %v363 = vpack.c.b16 %v305, %v304
  %v364 = vpack.c.b16 %v307, %v306
  %v365 = vpack.c.b16 %v309, %v308
  %v366 = vpack.c.b16 %v311, %v310
  %v367 = vpack.c.b16 %v313, %v312
  %v368 = vpack.c.b16 %v315, %v314
  %v369 = vpack.c.b16 %v317, %v316
  %v370 = vpack.c.b16 %v319, %v318
  %v371 = vpack.c.b16 %v321, %v320
  %v372 = vpack.c.b16 %v323, %v322
  %v373 = vpack.c.b16 %v325, %v324
  %v374 = vpack.c.b16 %v327, %v326
  %v375 = vpack.c.b16 %v329, %v328
  %v376 = vpack.c.b16 %v331, %v330
  %v377 = vpack.c.b16 %v333, %v332
  %v378 = vpack.c.b16 %v335, %v334
  %v379 = vpack.c.b16 %v337, %v336
  %v380 = vpack.c.b16 %v339, %v338
  %v381 = vpack.c.b16 %v341, %v340
  %422 = vmatpush.bf16.msra.mxu0 %v349
  %423 = vmatpush.bf16.msra.mxu0 %v348
  %424 = vmatpush.bf16.msra.mxu0 %v347
  %425 = vmatpush.bf16.msra.mxu0 %v346
  %426 = vmatpush.bf16.msra.mxu0 %v345
  %427 = vmatpush.bf16.msra.mxu0 %v344
  %428 = vmatpush.bf16.msra.mxu0 %v343
  %429 = vmatpush.bf16.msra.mxu0 %v342
  %430 = vmatmul.bf16.gmra.mxu0 %v162
  %v431 = vpop.f32.mrf.mxu0
  %v432 = vadd.f32 %v113, %v431
  %v433 = vpop.f32.mrf.mxu0
  %v434 = vadd.f32 %v118, %v433
  %435 = vmatmul.bf16.gmra.mxu0 %v167
  %v436 = vpop.f32.mrf.mxu0
  %v437 = vadd.f32 %v123, %v436
  %v438 = vpop.f32.mrf.mxu0
  %v439 = vadd.f32 %v128, %v438
  %440 = vdwg.mxu0
  %441 = vmatpush.bf16.msra.mxu0 %v357
  %442 = vmatpush.bf16.msra.mxu0 %v356
  %443 = vmatpush.bf16.msra.mxu0 %v355
  %444 = vmatpush.bf16.msra.mxu0 %v354
  %445 = vmatpush.bf16.msra.mxu0 %v353
  %446 = vmatpush.bf16.msra.mxu0 %v352
  %447 = vmatpush.bf16.msra.mxu0 %v351
  %448 = vmatpush.bf16.msra.mxu0 %v350
  %449 = vmatmul.bf16.gmra.mxu0 %v163
  %v450 = vpop.f32.mrf.mxu0
  %v451 = vadd.f32 %v432, %v450
  %v452 = vpop.f32.mrf.mxu0
  %v453 = vadd.f32 %v434, %v452
  %454 = vmatmul.bf16.gmra.mxu0 %v168
  %v455 = vpop.f32.mrf.mxu0
  %v456 = vadd.f32 %v437, %v455
  %v457 = vpop.f32.mrf.mxu0
  %v458 = vadd.f32 %v439, %v457
  %459 = vdwg.mxu0
  %460 = vmatpush.bf16.msra.mxu0 %v365
  %461 = vmatpush.bf16.msra.mxu0 %v364
  %462 = vmatpush.bf16.msra.mxu0 %v363
  %463 = vmatpush.bf16.msra.mxu0 %v362
  %464 = vmatpush.bf16.msra.mxu0 %v361
  %465 = vmatpush.bf16.msra.mxu0 %v360
  %466 = vmatpush.bf16.msra.mxu0 %v359
  %467 = vmatpush.bf16.msra.mxu0 %v358
  %468 = vmatmul.bf16.gmra.mxu0 %v164
  %v469 = vpop.f32.mrf.mxu0
  %v470 = vadd.f32 %v451, %v469
  %v471 = vpop.f32.mrf.mxu0
  %v472 = vadd.f32 %v453, %v471
  %473 = vmatmul.bf16.gmra.mxu0 %v169
  %v474 = vpop.f32.mrf.mxu0
  %v475 = vadd.f32 %v456, %v474
  %v476 = vpop.f32.mrf.mxu0
  %v477 = vadd.f32 %v458, %v476
  %478 = vdwg.mxu0
  %479 = vmatpush.bf16.msra.mxu0 %v373
  %480 = vmatpush.bf16.msra.mxu0 %v372
  %481 = vmatpush.bf16.msra.mxu0 %v371
  %482 = vmatpush.bf16.msra.mxu0 %v370
  %483 = vmatpush.bf16.msra.mxu0 %v369
  %484 = vmatpush.bf16.msra.mxu0 %v368
  %485 = vmatpush.bf16.msra.mxu0 %v367
  %486 = vmatpush.bf16.msra.mxu0 %v366
  %487 = vmatmul.bf16.gmra.mxu0 %v165
  %v488 = vpop.f32.mrf.mxu0
  %v489 = vadd.f32 %v470, %v488
  %v490 = vpop.f32.mrf.mxu0
  %v491 = vadd.f32 %v472, %v490
  %492 = vmatmul.bf16.gmra.mxu0 %v170
  %v493 = vpop.f32.mrf.mxu0
  %v494 = vadd.f32 %v475, %v493
  %v495 = vpop.f32.mrf.mxu0
  %v496 = vadd.f32 %v477, %v495
  %497 = vdwg.mxu0
  %498 = vmatpush.bf16.msra.mxu0 %v381
  %499 = vmatpush.bf16.msra.mxu0 %v380
  %500 = vmatpush.bf16.msra.mxu0 %v379
  %501 = vmatpush.bf16.msra.mxu0 %v378
  %502 = vmatpush.bf16.msra.mxu0 %v377
  %503 = vmatpush.bf16.msra.mxu0 %v376
  %504 = vmatpush.bf16.msra.mxu0 %v375
  %505 = vmatpush.bf16.msra.mxu0 %v374
  %506 = vmatmul.bf16.gmra.mxu0 %v166
  %v507 = vpop.f32.mrf.mxu0
  %v508 = vadd.f32 %v489, %v507
  %v509 = vpop.f32.mrf.mxu0
  %v510 = vadd.f32 %v491, %v509
  %511 = vmatmul.bf16.gmra.mxu0 %v171
  %v512 = vpop.f32.mrf.mxu0
  %v513 = vadd.f32 %v494, %v512
  %v514 = vpop.f32.mrf.mxu0
  %v515 = vadd.f32 %v496, %v514
  %516 = vdwg.mxu0
  %v517 = vmax.f32 %v508, 0.0
  %v518 = vmax.f32 %v510, 0.0
  %v519 = vmax.f32 %v513, 0.0
  %v520 = vmax.f32 %v515, 0.0
  %521 = vst [vmem:[%s3] sm:$0xff] %v517
  %522 = vst [vmem:[%s3 + $0x8] sm:$0xff] %v518
  %523 = vst [vmem:[%s3 + $0x10] sm:$0xff] %v519
  %524 = vst [vmem:[%s3 + $0x18] sm:$0xff] %v520
  // Predicated region
  $region14: #{deepmind_forward.5} parent=0 // pred_check
    _
  $region15: #{deepmind_forward.5} parent=0 // pred_check_branch
    %526 = sbr.rel (0) target = $region17
  $region16: #{deepmind_forward.5} parent=0 // pred_region
    _
  $region17: #{deepmind_forward.5} parent=0 // pred_fallthru
    _
  // Predicated region
  $region18: #{deepmind_forward.5} parent=0 // pred_check
    _
  $region19: #{deepmind_forward.5} parent=0 // pred_check_branch
    %528 = sbr.rel (0) target = $region21
  $region20: #{deepmind_forward.5} parent=0 // pred_region
    _
  $region21: #{deepmind_forward.5} parent=0 // pred_fallthru
    _

</llo_original>
